<compile_context>
chip_gen: v6e
topology: v6e:2x2x1
jax: 0.10.0
libtpu: 0.0.40
codegen_flags: <defaults>
</compile_context>

<pallas_src>
import functools

import jax
import jax.numpy as jnp
from jax.experimental import pallas as pl
from jax.experimental.pallas import tpu as pltpu


# -----------------------------------------------------------------------------
# Fused whole-network kernel (one batch element per grid step).
# -----------------------------------------------------------------------------
def _fused_network_kernel(*refs, conv_cfgs, head_cfg):
  """refs = (x, w_0..w_{n-1}, w_head, b_packed, out, pool_scratch).

  conv_cfgs: tuple of (k, c_out, l_conv, pool_k, pool_stride, p_out, bias_row)
  head_cfg:  (p_last, num_classes, bias_row)
  """
  n_conv = len(conv_cfgs)
  x_ref = refs[0]
  w_refs = refs[1:1 + n_conv]
  wh_ref = refs[1 + n_conv]
  b_ref = refs[2 + n_conv]
  o_ref = refs[3 + n_conv]
  pool_ref = refs[4 + n_conv]

  h = x_ref[0].astype(jnp.float32)                       # (L0, C0)

  for w_ref, cfg in zip(w_refs, conv_cfgs):
    k, c_out, l_conv, pool_k, pool_stride, p_out, b_row = cfg
    bias = b_ref[b_row:b_row + 1, 0:c_out]               # (1, c_out)

    # Conv1d as K shifted-accumulate matmuls (no im2col concatenates).
    acc = jnp.dot(h[0:l_conv, :], w_ref[0], preferred_element_type=jnp.float32)
    for kk in range(1, k):
      acc = acc + jnp.dot(h[kk:kk + l_conv, :], w_ref[kk],
                          preferred_element_type=jnp.float32)
    acc = acc + bias                                     # (l_conv, c_out)

    if pool_k == 1 and pool_stride == 1:
      h = jnp.maximum(acc, 0.0)                          # stem: ReLU only
    else:
      # MaxPool1d: result is already length-major, so the pool taps are plain
      # sublane-strided reads of the scratch -- no transpose needed.
      pool_ref[0:l_conv, 0:c_out] = acc

      def _tap(j):
        if pool_stride == 1:
          return pool_ref[pl.ds(j, p_out), :]
        return pool_ref[pl.ds(j, p_out, stride=pool_stride), :]

      pooled = _tap(0)
      for j in range(1, pool_k):
        pooled = jnp.maximum(pooled, _tap(j))
      h = jnp.maximum(pooled[:, 0:c_out], 0.0)           # MaxPool -> ReLU

  # Classifier head: Flatten (torch channel-major) + Linear, expressed as
  # p_last accumulated (1, C) @ (C, num_classes) matmuls (weights were
  # permuted on the host so no in-kernel flatten is required).
  p_last, num_classes, b_row_head = head_cfg
  logits = b_ref[b_row_head:b_row_head + 1, 0:num_classes]   # (1, num_classes)
  for p in range(p_last):
    logits = logits + jnp.dot(h[p:p + 1, :], wh_ref[p],
                              preferred_element_type=jnp.float32)
  o_ref[0] = logits.astype(o_ref.dtype)


# -----------------------------------------------------------------------------
# Wrapper: host-side layout plumbing + single pallas_call.
# -----------------------------------------------------------------------------
def network_forward(x, params, *, stride, pool_k, pool_stride):
  """x: (N, C_in, L) -> logits (N, num_classes). Matches Network.forward."""
  n, c_in, l = x.shape
  x = x.astype(jnp.float32)

  # --- Stem: rewrite the stride-3 conv as a stride-1 conv via space-to-depth.
  w_stem, b_stem = params["stem"]
  c_stem, _, k_stem = w_stem.shape
  stem_stride = 3
  assert k_stem % stem_stride == 0, "stem kernel_size must be divisible by its stride"
  # Truncating L to a multiple of the stride is lossless when K % stride == 0
  # (the last PyTorch conv window still fits entirely in the kept samples).
  l_keep = (l // stem_stride) * stem_stride
  l_s2d = l_keep // stem_stride
  x_s2d = x[:, :, :l_keep].reshape(n, c_in, l_s2d, stem_stride)
  x_s2d = x_s2d.transpose(0, 2, 1, 3).reshape(n, l_s2d, c_in * stem_stride)

  k_eq = k_stem // stem_stride
  w0 = w_stem.reshape(c_stem, c_in, k_eq, stem_stride).transpose(2, 1, 3, 0)
  w0 = w0.reshape(k_eq, c_in * stem_stride, c_stem).astype(jnp.float32)

  conv_ws = [w0]
  biases = [b_stem]
  conv_cfgs = []

  l_conv = l_s2d - k_eq + 1
  conv_cfgs.append((k_eq, c_stem, l_conv, 1, 1, l_conv, 0))   # stem: no pool
  l_cur, c_cur = l_conv, c_stem

  # --- Conv blocks: Conv1d -> MaxPool1d -> ReLU.
  # TODO(synk): conv1dblock stride != 1 would need another space-to-depth pass;
  # not used by this Network configuration.
  assert stride == 1, "conv1dblock stride != 1 not supported"
  for idx, (w, b) in enumerate(params["blocks"]):
    c_out, c_in_b, k = w.shape
    assert c_in_b == c_cur
    conv_ws.append(jnp.transpose(w, (2, 1, 0)).astype(jnp.float32))  # (K, C_in, C_out)
    biases.append(b)
    l_conv = l_cur - k + 1
    p_out = (l_conv - pool_k) // pool_stride + 1
    conv_cfgs.append((k, c_out, l_conv, pool_k, pool_stride, p_out, idx + 1))
    l_cur, c_cur = p_out, c_out

  # --- Head: Flatten (channel-major, like torch) + Linear.
  w_fc, b_fc = params["head"]
  num_classes = w_fc.shape[0]
  p_last, c_last = l_cur, c_cur
  assert w_fc.shape[1] == c_last * p_last
  # wh[p, c, cls] = w_fc[cls, c * p_last + p]
  wh = w_fc.reshape(num_classes, c_last, p_last).transpose(2, 1, 0)
  wh = wh.astype(jnp.float32)
  biases.append(b_fc)
  head_cfg = (p_last, num_classes, len(conv_cfgs))

  # --- Pack all biases into one small VMEM block (one DMA for all layers).
  max_c = max([cfg[1] for cfg in conv_cfgs] + [num_classes])
  b_packed = jnp.stack(
      [jnp.pad(b.astype(jnp.float32), (0, max_c - b.shape[0])) for b in biases],
      axis=0)                                            # (n_layers+1, max_c)

  # --- Pool scratch: large enough for the biggest pooled conv output.
  pooled_cfgs = [cfg for cfg in conv_cfgs if not (cfg[3] == 1 and cfg[4] == 1)]
  max_l = max([cfg[2] for cfg in pooled_cfgs] + [8])
  max_l = ((max_l + 7) // 8) * 8
  max_cs = max([cfg[1] for cfg in pooled_cfgs] + [8])

  kernel = functools.partial(_fused_network_kernel,
                             conv_cfgs=tuple(conv_cfgs), head_cfg=head_cfg)

  in_specs = (
      [pl.BlockSpec((1,) + x_s2d.shape[1:], lambda i: (i, 0, 0))]
      + [pl.BlockSpec(w.shape, lambda i: (0, 0, 0)) for w in conv_ws]
      + [pl.BlockSpec(wh.shape, lambda i: (0, 0, 0)),
         pl.BlockSpec(b_packed.shape, lambda i: (0, 0))])
  out_spec = pl.BlockSpec((1, 1, num_classes), lambda i: (i, 0, 0))

  # Rough cost estimate for the scheduler.
  flops = 0
  for cfg, w in zip(conv_cfgs, conv_ws):
    k, c_out, l_conv = cfg[0], cfg[1], cfg[2]
    flops += 2 * k * w.shape[1] * c_out * l_conv + 2 * c_out * l_conv
  flops += 2 * p_last * c_last * num_classes + num_classes
  flops *= n
  bytes_accessed = 4 * (x_s2d.size + sum(int(w.size) for w in conv_ws)
                        + wh.size + b_packed.size + n * num_classes)

  out = pl.pallas_call(
      kernel,
      out_shape=jax.ShapeDtypeStruct((n, 1, num_classes), jnp.float32),
      grid=(n,),
      in_specs=in_specs,
      out_specs=out_spec,
      scratch_shapes=[pltpu.VMEM((max_l, max_cs), jnp.float32)],
      compiler_params=pltpu.CompilerParams(
          dimension_semantics=("parallel",)),
      cost_estimate=pl.CostEstimate(flops=int(flops), transcendentals=0,
                                    bytes_accessed=int(bytes_accessed)),
  )(x_s2d, *conv_ws, wh, b_packed)
  return out.reshape(n, num_classes)


# -----------------------------------------------------------------------------
# Pure-JAX reference (mirrors the PyTorch module exactly).
# -----------------------------------------------------------------------------
def _reference_forward(x, params, *, stride, pool_k, pool_stride):
  hp = jax.lax.Precision.HIGHEST
  w_stem, b_stem = params["stem"]
  h = jax.lax.conv_general_dilated(
      x, w_stem, window_strides=(3,), padding=[(0, 0)],
      dimension_numbers=("NCH", "OIH", "NCH"), precision=hp)
  h = jnp.maximum(h + b_stem[None, :, None], 0.0)
  for w, b in params["blocks"]:
    y = jax.lax.conv_general_dilated(
        h, w, window_strides=(stride,), padding=[(0, 0)],
        dimension_numbers=("NCH", "OIH", "NCH"), precision=hp)
    y = y + b[None, :, None]
    y = jax.lax.reduce_window(y, -jnp.inf, jax.lax.max,
                              (1, 1, pool_k), (1, 1, pool_stride), "VALID")
    h = jnp.maximum(y, 0.0)
  flat = h.reshape(h.shape[0], -1)
  w_fc, b_fc = params["head"]
  return jnp.dot(flat, w_fc.T, precision=hp) + b_fc[None, :]


if __name__ == "__main__":
  # Network hyperparameters (stage() with no_layer=1 -> 3 conv1dblocks).
  stem_channels = 4
  out_channels = 8
  kernel_size = 3
  stride = 1
  pool_kernal = 2
  stride_step = 2
  num_classes = 7

  N, C_IN, L = 2, 1, 198            # (batch, channels, audio length)

  # Static shape inference (what LazyConv1d / LazyLinear resolve on first call).
  block_io = [(stem_channels, out_channels),
              (out_channels, out_channels),
              (out_channels, out_channels * 2)]
  l = (L - 9) // 3 + 1              # stem output length
  for _ci, _co in block_io:
    l_conv = (l - kernel_size) // stride + 1
    l = (l_conv - pool_kernal) // stride_step + 1
  feat = block_io[-1][1] * l        # Flatten feature size

  key = jax.random.PRNGKey(0)
  keys = iter(jax.random.split(key, 2 + 2 * len(block_io) + 3))

  def uinit(k, shape, fan_in):
    bound = 1.0 / (fan_in ** 0.5)
    return jax.random.uniform(k, shape, minval=-bound, maxval=bound,
                              dtype=jnp.float32)

  params = {
      "stem": (uinit(next(keys), (stem_channels, C_IN, 9), C_IN * 9),
               uinit(next(keys), (stem_channels,), C_IN * 9)),
      "blocks": [
          (uinit(next(keys), (co, ci, kernel_size), ci * kernel_size),
           uinit(next(keys), (co,), ci * kernel_size))
          for ci, co in block_io
      ],
      "head": (uinit(next(keys), (num_classes, feat), feat),
               uinit(next(keys), (num_classes,), feat)),
  }

  x = jax.random.normal(next(keys), (N, C_IN, L), dtype=jnp.float32)

  out = network_forward(x, params, stride=stride, pool_k=pool_kernal,
                        pool_stride=stride_step)
  out = jax.block_until_ready(out)

  ref = _reference_forward(x, params, stride=stride, pool_k=pool_kernal,
                           pool_stride=stride_step)

  assert out.shape == ref.shape == (N, num_classes), (out.shape, ref.shape)
  assert jnp.allclose(out, ref, atol=1e-4, rtol=1e-4), float(
      jnp.max(jnp.abs(out - ref)))

  print("KERNEL_OK")
</pallas_src>

<mosaic_0001>
module attributes {stable_mosaic.version = 11 : i64} {
  func.func @_fused_network_kernel(%arg0: i32, %arg1: memref<1x66x3xf32, #tpu.memory_space<vmem>>, %arg2: memref<3x3x4xf32, #tpu.memory_space<vmem>>, %arg3: memref<3x4x8xf32, #tpu.memory_space<vmem>>, %arg4: memref<3x8x8xf32, #tpu.memory_space<vmem>>, %arg5: memref<3x8x16xf32, #tpu.memory_space<vmem>>, %arg6: memref<6x16x7xf32, #tpu.memory_space<vmem>>, %arg7: memref<5x16xf32, #tpu.memory_space<vmem>>, %arg8: memref<1x1x7xf32, #tpu.memory_space<vmem>>, %arg9: memref<64x16xf32, #tpu.memory_space<vmem>>) attributes {dimension_semantics = [#tpu.dimension_semantics<parallel>], iteration_bounds = array<i64: 2>, scalar_prefetch = 0 : i64, scratch_operands = 1 : i64, tpu.core_type = #tpu.core_type<tc>, window_params = [{transform_indices = @transform_0, window_bounds = array<i64: 1, 66, 3>}, {pipeline_mode = #tpu.pipeline_mode<synchronous>, transform_indices = @transform_1, window_bounds = array<i64: 3, 3, 4>}, {pipeline_mode = #tpu.pipeline_mode<synchronous>, transform_indices = @transform_2, window_bounds = array<i64: 3, 4, 8>}, {pipeline_mode = #tpu.pipeline_mode<synchronous>, transform_indices = @transform_3, window_bounds = array<i64: 3, 8, 8>}, {pipeline_mode = #tpu.pipeline_mode<synchronous>, transform_indices = @transform_4, window_bounds = array<i64: 3, 8, 16>}, {pipeline_mode = #tpu.pipeline_mode<synchronous>, transform_indices = @transform_5, window_bounds = array<i64: 6, 16, 7>}, {pipeline_mode = #tpu.pipeline_mode<synchronous>, transform_indices = @transform_6, window_bounds = array<i64: 5, 16>}, {transform_indices = @transform_7, window_bounds = array<i64: 1, 1, 7>}]} {
    %c0 = arith.constant 0 : index
    %c0_0 = arith.constant 0 : index
    %c0_1 = arith.constant 0 : index
    %0 = vector.load %arg1[%c0, %c0_0, %c0_1] : memref<1x66x3xf32, #tpu.memory_space<vmem>>, vector<1x66x3xf32>
    %1 = vector.shape_cast %0 : vector<1x66x3xf32> to vector<66x3xf32>
    %c0_2 = arith.constant 0 : index
    %c0_3 = arith.constant 0 : index
    %2 = vector.load %arg7[%c0_2, %c0_3] : memref<5x16xf32, #tpu.memory_space<vmem>>, vector<1x4xf32>
    %3 = vector.extract_strided_slice %1 {offsets = [0, 0], sizes = [64, 3], strides = [1, 1]} : vector<66x3xf32> to vector<64x3xf32>
    %c0_4 = arith.constant 0 : index
    %c0_5 = arith.constant 0 : index
    %c0_6 = arith.constant 0 : index
    %4 = vector.load %arg2[%c0_4, %c0_5, %c0_6] : memref<3x3x4xf32, #tpu.memory_space<vmem>>, vector<1x3x4xf32>
    %5 = vector.shape_cast %4 : vector<1x3x4xf32> to vector<3x4xf32>
    %cst = arith.constant dense<0.000000e+00> : vector<64x4xf32>
    %6 = tpu.matmul %3, %5, %cst {dimension_numbers = #tpu.dot_dimension_numbers<[1], [0], [0], [1], [0, 0, 1, 1], [], []>} : vector<64x3xf32>, vector<3x4xf32>, vector<64x4xf32> -> vector<64x4xf32>
    %7 = vector.extract_strided_slice %1 {offsets = [1, 0], sizes = [64, 3], strides = [1, 1]} : vector<66x3xf32> to vector<64x3xf32>
    %c1 = arith.constant 1 : index
    %c0_7 = arith.constant 0 : index
    %c0_8 = arith.constant 0 : index
    %8 = vector.load %arg2[%c1, %c0_7, %c0_8] : memref<3x3x4xf32, #tpu.memory_space<vmem>>, vector<1x3x4xf32>
    %9 = vector.shape_cast %8 : vector<1x3x4xf32> to vector<3x4xf32>
    %cst_9 = arith.constant dense<0.000000e+00> : vector<64x4xf32>
    %10 = tpu.matmul %7, %9, %cst_9 {dimension_numbers = #tpu.dot_dimension_numbers<[1], [0], [0], [1], [0, 0, 1, 1], [], []>} : vector<64x3xf32>, vector<3x4xf32>, vector<64x4xf32> -> vector<64x4xf32>
    %11 = arith.addf %6, %10 : vector<64x4xf32>
    %12 = vector.extract_strided_slice %1 {offsets = [2, 0], sizes = [64, 3], strides = [1, 1]} : vector<66x3xf32> to vector<64x3xf32>
    %c2 = arith.constant 2 : index
    %c0_10 = arith.constant 0 : index
    %c0_11 = arith.constant 0 : index
    %13 = vector.load %arg2[%c2, %c0_10, %c0_11] : memref<3x3x4xf32, #tpu.memory_space<vmem>>, vector<1x3x4xf32>
    %14 = vector.shape_cast %13 : vector<1x3x4xf32> to vector<3x4xf32>
    %cst_12 = arith.constant dense<0.000000e+00> : vector<64x4xf32>
    %15 = tpu.matmul %12, %14, %cst_12 {dimension_numbers = #tpu.dot_dimension_numbers<[1], [0], [0], [1], [0, 0, 1, 1], [], []>} : vector<64x3xf32>, vector<3x4xf32>, vector<64x4xf32> -> vector<64x4xf32>
    %16 = arith.addf %11, %15 : vector<64x4xf32>
    %17 = vector.broadcast %2 : vector<1x4xf32> to vector<64x4xf32>
    %18 = arith.addf %16, %17 : vector<64x4xf32>
    %cst_13 = arith.constant 0.000000e+00 : f32
    %19 = vector.broadcast %cst_13 : f32 to vector<64x4xf32>
    %20 = arith.maximumf %18, %19 : vector<64x4xf32>
    %c1_14 = arith.constant 1 : index
    %c0_15 = arith.constant 0 : index
    %21 = vector.load %arg7[%c1_14, %c0_15] : memref<5x16xf32, #tpu.memory_space<vmem>>, vector<1x8xf32>
    %22 = vector.extract_strided_slice %20 {offsets = [0, 0], sizes = [62, 4], strides = [1, 1]} : vector<64x4xf32> to vector<62x4xf32>
    %c0_16 = arith.constant 0 : index
    %c0_17 = arith.constant 0 : index
    %c0_18 = arith.constant 0 : index
    %23 = vector.load %arg3[%c0_16, %c0_17, %c0_18] : memref<3x4x8xf32, #tpu.memory_space<vmem>>, vector<1x4x8xf32>
    %24 = vector.shape_cast %23 : vector<1x4x8xf32> to vector<4x8xf32>
    %cst_19 = arith.constant dense<0.000000e+00> : vector<62x8xf32>
    %25 = tpu.matmul %22, %24, %cst_19 {dimension_numbers = #tpu.dot_dimension_numbers<[1], [0], [0], [1], [0, 0, 1, 1], [], []>} : vector<62x4xf32>, vector<4x8xf32>, vector<62x8xf32> -> vector<62x8xf32>
    %26 = vector.extract_strided_slice %20 {offsets = [1, 0], sizes = [62, 4], strides = [1, 1]} : vector<64x4xf32> to vector<62x4xf32>
    %c1_20 = arith.constant 1 : index
    %c0_21 = arith.constant 0 : index
    %c0_22 = arith.constant 0 : index
    %27 = vector.load %arg3[%c1_20, %c0_21, %c0_22] : memref<3x4x8xf32, #tpu.memory_space<vmem>>, vector<1x4x8xf32>
    %28 = vector.shape_cast %27 : vector<1x4x8xf32> to vector<4x8xf32>
    %cst_23 = arith.constant dense<0.000000e+00> : vector<62x8xf32>
    %29 = tpu.matmul %26, %28, %cst_23 {dimension_numbers = #tpu.dot_dimension_numbers<[1], [0], [0], [1], [0, 0, 1, 1], [], []>} : vector<62x4xf32>, vector<4x8xf32>, vector<62x8xf32> -> vector<62x8xf32>
    %30 = arith.addf %25, %29 : vector<62x8xf32>
    %31 = vector.extract_strided_slice %20 {offsets = [2, 0], sizes = [62, 4], strides = [1, 1]} : vector<64x4xf32> to vector<62x4xf32>
    %c2_24 = arith.constant 2 : index
    %c0_25 = arith.constant 0 : index
    %c0_26 = arith.constant 0 : index
    %32 = vector.load %arg3[%c2_24, %c0_25, %c0_26] : memref<3x4x8xf32, #tpu.memory_space<vmem>>, vector<1x4x8xf32>
    %33 = vector.shape_cast %32 : vector<1x4x8xf32> to vector<4x8xf32>
    %cst_27 = arith.constant dense<0.000000e+00> : vector<62x8xf32>
    %34 = tpu.matmul %31, %33, %cst_27 {dimension_numbers = #tpu.dot_dimension_numbers<[1], [0], [0], [1], [0, 0, 1, 1], [], []>} : vector<62x4xf32>, vector<4x8xf32>, vector<62x8xf32> -> vector<62x8xf32>
    %35 = arith.addf %30, %34 : vector<62x8xf32>
    %36 = vector.broadcast %21 : vector<1x8xf32> to vector<62x8xf32>
    %37 = arith.addf %35, %36 : vector<62x8xf32>
    %c0_28 = arith.constant 0 : index
    %c0_29 = arith.constant 0 : index
    %38 = vector.load %arg9[%c0_28, %c0_29] : memref<64x16xf32, #tpu.memory_space<vmem>>, vector<62x8xf32>
    tpu.vector_store %arg9[%c0_28, %c0_29], %37 {strides = array<i32>} : memref<64x16xf32, #tpu.memory_space<vmem>>, vector<62x8xf32>,
    %c0_30 = arith.constant 0 : index
    %c0_31 = arith.constant 0 : index
    %39 = tpu.strided_load %arg9[%c0_30, %c0_31] {strides = array<i32: 2, 1>} : memref<64x16xf32, #tpu.memory_space<vmem>>, vector<31x16xf32>
    %c1_32 = arith.constant 1 : index
    %c0_33 = arith.constant 0 : index
    %40 = tpu.strided_load %arg9[%c1_32, %c0_33] {strides = array<i32: 2, 1>} : memref<64x16xf32, #tpu.memory_space<vmem>>, vector<31x16xf32>
    %41 = arith.maximumf %39, %40 : vector<31x16xf32>
    %42 = vector.extract_strided_slice %41 {offsets = [0, 0], sizes = [31, 8], strides = [1, 1]} : vector<31x16xf32> to vector<31x8xf32>
    %cst_34 = arith.constant 0.000000e+00 : f32
    %43 = vector.broadcast %cst_34 : f32 to vector<31x8xf32>
    %44 = arith.maximumf %42, %43 : vector<31x8xf32>
    %c2_35 = arith.constant 2 : index
    %c0_36 = arith.constant 0 : index
    %45 = vector.load %arg7[%c2_35, %c0_36] : memref<5x16xf32, #tpu.memory_space<vmem>>, vector<1x8xf32>
    %46 = vector.extract_strided_slice %44 {offsets = [0, 0], sizes = [29, 8], strides = [1, 1]} : vector<31x8xf32> to vector<29x8xf32>
    %c0_37 = arith.constant 0 : index
    %c0_38 = arith.constant 0 : index
    %c0_39 = arith.constant 0 : index
    %47 = vector.load %arg4[%c0_37, %c0_38, %c0_39] : memref<3x8x8xf32, #tpu.memory_space<vmem>>, vector<1x8x8xf32>
    %48 = vector.shape_cast %47 : vector<1x8x8xf32> to vector<8x8xf32>
    %cst_40 = arith.constant dense<0.000000e+00> : vector<29x8xf32>
    %49 = tpu.matmul %46, %48, %cst_40 {dimension_numbers = #tpu.dot_dimension_numbers<[1], [0], [0], [1], [0, 0, 1, 1], [], []>} : vector<29x8xf32>, vector<8x8xf32>, vector<29x8xf32> -> vector<29x8xf32>
    %50 = vector.extract_strided_slice %44 {offsets = [1, 0], sizes = [29, 8], strides = [1, 1]} : vector<31x8xf32> to vector<29x8xf32>
    %c1_41 = arith.constant 1 : index
    %c0_42 = arith.constant 0 : index
    %c0_43 = arith.constant 0 : index
    %51 = vector.load %arg4[%c1_41, %c0_42, %c0_43] : memref<3x8x8xf32, #tpu.memory_space<vmem>>, vector<1x8x8xf32>
    %52 = vector.shape_cast %51 : vector<1x8x8xf32> to vector<8x8xf32>
    %cst_44 = arith.constant dense<0.000000e+00> : vector<29x8xf32>
    %53 = tpu.matmul %50, %52, %cst_44 {dimension_numbers = #tpu.dot_dimension_numbers<[1], [0], [0], [1], [0, 0, 1, 1], [], []>} : vector<29x8xf32>, vector<8x8xf32>, vector<29x8xf32> -> vector<29x8xf32>
    %54 = arith.addf %49, %53 : vector<29x8xf32>
    %55 = vector.extract_strided_slice %44 {offsets = [2, 0], sizes = [29, 8], strides = [1, 1]} : vector<31x8xf32> to vector<29x8xf32>
    %c2_45 = arith.constant 2 : index
    %c0_46 = arith.constant 0 : index
    %c0_47 = arith.constant 0 : index
    %56 = vector.load %arg4[%c2_45, %c0_46, %c0_47] : memref<3x8x8xf32, #tpu.memory_space<vmem>>, vector<1x8x8xf32>
    %57 = vector.shape_cast %56 : vector<1x8x8xf32> to vector<8x8xf32>
    %cst_48 = arith.constant dense<0.000000e+00> : vector<29x8xf32>
    %58 = tpu.matmul %55, %57, %cst_48 {dimension_numbers = #tpu.dot_dimension_numbers<[1], [0], [0], [1], [0, 0, 1, 1], [], []>} : vector<29x8xf32>, vector<8x8xf32>, vector<29x8xf32> -> vector<29x8xf32>
    %59 = arith.addf %54, %58 : vector<29x8xf32>
    %60 = vector.broadcast %45 : vector<1x8xf32> to vector<29x8xf32>
    %61 = arith.addf %59, %60 : vector<29x8xf32>
    %c0_49 = arith.constant 0 : index
    %c0_50 = arith.constant 0 : index
    %62 = vector.load %arg9[%c0_49, %c0_50] : memref<64x16xf32, #tpu.memory_space<vmem>>, vector<29x8xf32>
    tpu.vector_store %arg9[%c0_49, %c0_50], %61 {strides = array<i32>} : memref<64x16xf32, #tpu.memory_space<vmem>>, vector<29x8xf32>,
    %c0_51 = arith.constant 0 : index
    %c0_52 = arith.constant 0 : index
    %63 = tpu.strided_load %arg9[%c0_51, %c0_52] {strides = array<i32: 2, 1>} : memref<64x16xf32, #tpu.memory_space<vmem>>, vector<14x16xf32>
    %c1_53 = arith.constant 1 : index
    %c0_54 = arith.constant 0 : index
    %64 = tpu.strided_load %arg9[%c1_53, %c0_54] {strides = array<i32: 2, 1>} : memref<64x16xf32, #tpu.memory_space<vmem>>, vector<14x16xf32>
    %65 = arith.maximumf %63, %64 : vector<14x16xf32>
    %66 = vector.extract_strided_slice %65 {offsets = [0, 0], sizes = [14, 8], strides = [1, 1]} : vector<14x16xf32> to vector<14x8xf32>
    %cst_55 = arith.constant 0.000000e+00 : f32
    %67 = vector.broadcast %cst_55 : f32 to vector<14x8xf32>
    %68 = arith.maximumf %66, %67 : vector<14x8xf32>
    %c3 = arith.constant 3 : index
    %c0_56 = arith.constant 0 : index
    %69 = vector.load %arg7[%c3, %c0_56] : memref<5x16xf32, #tpu.memory_space<vmem>>, vector<1x16xf32>
    %70 = vector.extract_strided_slice %68 {offsets = [0, 0], sizes = [12, 8], strides = [1, 1]} : vector<14x8xf32> to vector<12x8xf32>
    %c0_57 = arith.constant 0 : index
    %c0_58 = arith.constant 0 : index
    %c0_59 = arith.constant 0 : index
    %71 = vector.load %arg5[%c0_57, %c0_58, %c0_59] : memref<3x8x16xf32, #tpu.memory_space<vmem>>, vector<1x8x16xf32>
    %72 = vector.shape_cast %71 : vector<1x8x16xf32> to vector<8x16xf32>
    %cst_60 = arith.constant dense<0.000000e+00> : vector<12x16xf32>
    %73 = tpu.matmul %70, %72, %cst_60 {dimension_numbers = #tpu.dot_dimension_numbers<[1], [0], [0], [1], [0, 0, 1, 1], [], []>} : vector<12x8xf32>, vector<8x16xf32>, vector<12x16xf32> -> vector<12x16xf32>
    %74 = vector.extract_strided_slice %68 {offsets = [1, 0], sizes = [12, 8], strides = [1, 1]} : vector<14x8xf32> to vector<12x8xf32>
    %c1_61 = arith.constant 1 : index
    %c0_62 = arith.constant 0 : index
    %c0_63 = arith.constant 0 : index
    %75 = vector.load %arg5[%c1_61, %c0_62, %c0_63] : memref<3x8x16xf32, #tpu.memory_space<vmem>>, vector<1x8x16xf32>
    %76 = vector.shape_cast %75 : vector<1x8x16xf32> to vector<8x16xf32>
    %cst_64 = arith.constant dense<0.000000e+00> : vector<12x16xf32>
    %77 = tpu.matmul %74, %76, %cst_64 {dimension_numbers = #tpu.dot_dimension_numbers<[1], [0], [0], [1], [0, 0, 1, 1], [], []>} : vector<12x8xf32>, vector<8x16xf32>, vector<12x16xf32> -> vector<12x16xf32>
    %78 = arith.addf %73, %77 : vector<12x16xf32>
    %79 = vector.extract_strided_slice %68 {offsets = [2, 0], sizes = [12, 8], strides = [1, 1]} : vector<14x8xf32> to vector<12x8xf32>
    %c2_65 = arith.constant 2 : index
    %c0_66 = arith.constant 0 : index
    %c0_67 = arith.constant 0 : index
    %80 = vector.load %arg5[%c2_65, %c0_66, %c0_67] : memref<3x8x16xf32, #tpu.memory_space<vmem>>, vector<1x8x16xf32>
    %81 = vector.shape_cast %80 : vector<1x8x16xf32> to vector<8x16xf32>
    %cst_68 = arith.constant dense<0.000000e+00> : vector<12x16xf32>
    %82 = tpu.matmul %79, %81, %cst_68 {dimension_numbers = #tpu.dot_dimension_numbers<[1], [0], [0], [1], [0, 0, 1, 1], [], []>} : vector<12x8xf32>, vector<8x16xf32>, vector<12x16xf32> -> vector<12x16xf32>
    %83 = arith.addf %78, %82 : vector<12x16xf32>
    %84 = vector.broadcast %69 : vector<1x16xf32> to vector<12x16xf32>
    %85 = arith.addf %83, %84 : vector<12x16xf32>
    %c0_69 = arith.constant 0 : index
    %c0_70 = arith.constant 0 : index
    %86 = vector.load %arg9[%c0_69, %c0_70] : memref<64x16xf32, #tpu.memory_space<vmem>>, vector<12x16xf32>
    tpu.vector_store %arg9[%c0_69, %c0_70], %85 {strides = array<i32>} : memref<64x16xf32, #tpu.memory_space<vmem>>, vector<12x16xf32>,
    %c0_71 = arith.constant 0 : index
    %c0_72 = arith.constant 0 : index
    %87 = tpu.strided_load %arg9[%c0_71, %c0_72] {strides = array<i32: 2, 1>} : memref<64x16xf32, #tpu.memory_space<vmem>>, vector<6x16xf32>
    %c1_73 = arith.constant 1 : index
    %c0_74 = arith.constant 0 : index
    %88 = tpu.strided_load %arg9[%c1_73, %c0_74] {strides = array<i32: 2, 1>} : memref<64x16xf32, #tpu.memory_space<vmem>>, vector<6x16xf32>
    %89 = arith.maximumf %87, %88 : vector<6x16xf32>
    %cst_75 = arith.constant 0.000000e+00 : f32
    %90 = vector.broadcast %cst_75 : f32 to vector<6x16xf32>
    %91 = arith.maximumf %89, %90 : vector<6x16xf32>
    %c4 = arith.constant 4 : index
    %c0_76 = arith.constant 0 : index
    %92 = vector.load %arg7[%c4, %c0_76] : memref<5x16xf32, #tpu.memory_space<vmem>>, vector<1x7xf32>
    %93 = vector.extract_strided_slice %91 {offsets = [0, 0], sizes = [1, 16], strides = [1, 1]} : vector<6x16xf32> to vector<1x16xf32>
    %c0_77 = arith.constant 0 : index
    %c0_78 = arith.constant 0 : index
    %c0_79 = arith.constant 0 : index
    %94 = vector.load %arg6[%c0_77, %c0_78, %c0_79] : memref<6x16x7xf32, #tpu.memory_space<vmem>>, vector<1x16x7xf32>
    %95 = vector.shape_cast %94 : vector<1x16x7xf32> to vector<16x7xf32>
    %cst_80 = arith.constant dense<0.000000e+00> : vector<1x7xf32>
    %96 = tpu.matmul %93, %95, %cst_80 {dimension_numbers = #tpu.dot_dimension_numbers<[1], [0], [0], [1], [0, 0, 1, 1], [], []>} : vector<1x16xf32>, vector<16x7xf32>, vector<1x7xf32> -> vector<1x7xf32>
    %97 = arith.addf %92, %96 : vector<1x7xf32>
    %98 = vector.extract_strided_slice %91 {offsets = [1, 0], sizes = [1, 16], strides = [1, 1]} : vector<6x16xf32> to vector<1x16xf32>
    %c1_81 = arith.constant 1 : index
    %c0_82 = arith.constant 0 : index
    %c0_83 = arith.constant 0 : index
    %99 = vector.load %arg6[%c1_81, %c0_82, %c0_83] : memref<6x16x7xf32, #tpu.memory_space<vmem>>, vector<1x16x7xf32>
    %100 = vector.shape_cast %99 : vector<1x16x7xf32> to vector<16x7xf32>
    %cst_84 = arith.constant dense<0.000000e+00> : vector<1x7xf32>
    %101 = tpu.matmul %98, %100, %cst_84 {dimension_numbers = #tpu.dot_dimension_numbers<[1], [0], [0], [1], [0, 0, 1, 1], [], []>} : vector<1x16xf32>, vector<16x7xf32>, vector<1x7xf32> -> vector<1x7xf32>
    %102 = arith.addf %97, %101 : vector<1x7xf32>
    %103 = vector.extract_strided_slice %91 {offsets = [2, 0], sizes = [1, 16], strides = [1, 1]} : vector<6x16xf32> to vector<1x16xf32>
    %c2_85 = arith.constant 2 : index
    %c0_86 = arith.constant 0 : index
    %c0_87 = arith.constant 0 : index
    %104 = vector.load %arg6[%c2_85, %c0_86, %c0_87] : memref<6x16x7xf32, #tpu.memory_space<vmem>>, vector<1x16x7xf32>
    %105 = vector.shape_cast %104 : vector<1x16x7xf32> to vector<16x7xf32>
    %cst_88 = arith.constant dense<0.000000e+00> : vector<1x7xf32>
    %106 = tpu.matmul %103, %105, %cst_88 {dimension_numbers = #tpu.dot_dimension_numbers<[1], [0], [0], [1], [0, 0, 1, 1], [], []>} : vector<1x16xf32>, vector<16x7xf32>, vector<1x7xf32> -> vector<1x7xf32>
    %107 = arith.addf %102, %106 : vector<1x7xf32>
    %108 = vector.extract_strided_slice %91 {offsets = [3, 0], sizes = [1, 16], strides = [1, 1]} : vector<6x16xf32> to vector<1x16xf32>
    %c3_89 = arith.constant 3 : index
    %c0_90 = arith.constant 0 : index
    %c0_91 = arith.constant 0 : index
    %109 = vector.load %arg6[%c3_89, %c0_90, %c0_91] : memref<6x16x7xf32, #tpu.memory_space<vmem>>, vector<1x16x7xf32>
    %110 = vector.shape_cast %109 : vector<1x16x7xf32> to vector<16x7xf32>
    %cst_92 = arith.constant dense<0.000000e+00> : vector<1x7xf32>
    %111 = tpu.matmul %108, %110, %cst_92 {dimension_numbers = #tpu.dot_dimension_numbers<[1], [0], [0], [1], [0, 0, 1, 1], [], []>} : vector<1x16xf32>, vector<16x7xf32>, vector<1x7xf32> -> vector<1x7xf32>
    %112 = arith.addf %107, %111 : vector<1x7xf32>
    %113 = vector.extract_strided_slice %91 {offsets = [4, 0], sizes = [1, 16], strides = [1, 1]} : vector<6x16xf32> to vector<1x16xf32>
    %c4_93 = arith.constant 4 : index
    %c0_94 = arith.constant 0 : index
    %c0_95 = arith.constant 0 : index
    %114 = vector.load %arg6[%c4_93, %c0_94, %c0_95] : memref<6x16x7xf32, #tpu.memory_space<vmem>>, vector<1x16x7xf32>
    %115 = vector.shape_cast %114 : vector<1x16x7xf32> to vector<16x7xf32>
    %cst_96 = arith.constant dense<0.000000e+00> : vector<1x7xf32>
    %116 = tpu.matmul %113, %115, %cst_96 {dimension_numbers = #tpu.dot_dimension_numbers<[1], [0], [0], [1], [0, 0, 1, 1], [], []>} : vector<1x16xf32>, vector<16x7xf32>, vector<1x7xf32> -> vector<1x7xf32>
    %117 = arith.addf %112, %116 : vector<1x7xf32>
    %118 = vector.extract_strided_slice %91 {offsets = [5, 0], sizes = [1, 16], strides = [1, 1]} : vector<6x16xf32> to vector<1x16xf32>
    %c5 = arith.constant 5 : index
    %c0_97 = arith.constant 0 : index
    %c0_98 = arith.constant 0 : index
    %119 = vector.load %arg6[%c5, %c0_97, %c0_98] : memref<6x16x7xf32, #tpu.memory_space<vmem>>, vector<1x16x7xf32>
    %120 = vector.shape_cast %119 : vector<1x16x7xf32> to vector<16x7xf32>
    %cst_99 = arith.constant dense<0.000000e+00> : vector<1x7xf32>
    %121 = tpu.matmul %118, %120, %cst_99 {dimension_numbers = #tpu.dot_dimension_numbers<[1], [0], [0], [1], [0, 0, 1, 1], [], []>} : vector<1x16xf32>, vector<16x7xf32>, vector<1x7xf32> -> vector<1x7xf32>
    %122 = arith.addf %117, %121 : vector<1x7xf32>
    %c0_100 = arith.constant 0 : index
    %c0_101 = arith.constant 0 : index
    %c0_102 = arith.constant 0 : index
    %123 = vector.load %arg8[%c0_100, %c0_101, %c0_102] : memref<1x1x7xf32, #tpu.memory_space<vmem>>, vector<1x1x7xf32>
    %124 = vector.shape_cast %123 : vector<1x1x7xf32> to vector<1x7xf32>
    %125 = vector.shape_cast %122 : vector<1x7xf32> to vector<1x1x7xf32>
    tpu.vector_store %arg8[%c0_100, %c0_101, %c0_102], %125 {strides = array<i32>} : memref<1x1x7xf32, #tpu.memory_space<vmem>>, vector<1x1x7xf32>,
    return
  }
  func.func @transform_0(%arg0: i32) -> (i32, i32, i32) {
    %c0_i32 = arith.constant 0 : i32
    %c0_i32_0 = arith.constant 0 : i32
    %c0_i32_1 = arith.constant 0 : i32
    return %arg0, %c0_i32, %c0_i32_0 : i32, i32, i32
  }
  func.func @transform_1(%arg0: i32) -> (i32, i32, i32) {
    %c0_i32 = arith.constant 0 : i32
    %c0_i32_0 = arith.constant 0 : i32
    %c0_i32_1 = arith.constant 0 : i32
    %c0_i32_2 = arith.constant 0 : i32
    return %c0_i32, %c0_i32_0, %c0_i32_1 : i32, i32, i32
  }
  func.func @transform_2(%arg0: i32) -> (i32, i32, i32) {
    %c0_i32 = arith.constant 0 : i32
    %c0_i32_0 = arith.constant 0 : i32
    %c0_i32_1 = arith.constant 0 : i32
    %c0_i32_2 = arith.constant 0 : i32
    return %c0_i32, %c0_i32_0, %c0_i32_1 : i32, i32, i32
  }
  func.func @transform_3(%arg0: i32) -> (i32, i32, i32) {
    %c0_i32 = arith.constant 0 : i32
    %c0_i32_0 = arith.constant 0 : i32
    %c0_i32_1 = arith.constant 0 : i32
    %c0_i32_2 = arith.constant 0 : i32
    return %c0_i32, %c0_i32_0, %c0_i32_1 : i32, i32, i32
  }
  func.func @transform_4(%arg0: i32) -> (i32, i32, i32) {
    %c0_i32 = arith.constant 0 : i32
    %c0_i32_0 = arith.constant 0 : i32
    %c0_i32_1 = arith.constant 0 : i32
    %c0_i32_2 = arith.constant 0 : i32
    return %c0_i32, %c0_i32_0, %c0_i32_1 : i32, i32, i32
  }
  func.func @transform_5(%arg0: i32) -> (i32, i32, i32) {
    %c0_i32 = arith.constant 0 : i32
    %c0_i32_0 = arith.constant 0 : i32
    %c0_i32_1 = arith.constant 0 : i32
    %c0_i32_2 = arith.constant 0 : i32
    return %c0_i32, %c0_i32_0, %c0_i32_1 : i32, i32, i32
  }
  func.func @transform_6(%arg0: i32) -> (i32, i32) {
    %c0_i32 = arith.constant 0 : i32
    %c0_i32_0 = arith.constant 0 : i32
    %c0_i32_1 = arith.constant 0 : i32
    return %c0_i32, %c0_i32_0 : i32, i32
  }
  func.func @transform_7(%arg0: i32) -> (i32, i32, i32) {
    %c0_i32 = arith.constant 0 : i32
    %c0_i32_0 = arith.constant 0 : i32
    %c0_i32_1 = arith.constant 0 : i32
    return %arg0, %c0_i32, %c0_i32_0 : i32, i32, i32
  }
}

</mosaic_0001>

<llo_original>
// kernel: tpu_custom_call.1
$region0: #{tpu_custom_call.1}
  #allocation0 [shape = 'u32[]', space=smem, size = 0x4, offset = 0x4, fixed_abs, tag = 'smem constant byte address 0x4 - core index']
  #allocation1 [shape = 'u32[144,128]{1,0:T(1,128)}', space=vmem, size = 0x12000, scoped, tag = 'internal scratch']
  #allocation2 [shape = 'f32[64,16]{1,0:T(8,128)}', space=vmem, size = 0x8000, scoped, tag = 'scratch operand']
  %s0 = inlined_call_operand.vmem [shape: f32[2,66,3], index: 0, kind: input, shape index: {}]
  %s1 = inlined_call_operand.vmem [shape: f32[3,3,4], index: 1, kind: input, shape index: {}]
  %s2 = inlined_call_operand.vmem [shape: f32[3,4,8], index: 2, kind: input, shape index: {}]
  %s3 = inlined_call_operand.vmem [shape: f32[3,8,8], index: 3, kind: input, shape index: {}]
  %s4 = inlined_call_operand.vmem [shape: f32[3,8,16], index: 4, kind: input, shape index: {}]
  %s5 = inlined_call_operand.vmem [shape: f32[6,16,7], index: 5, kind: input, shape index: {}]
  %s6 = inlined_call_operand.vmem [shape: f32[5,16], index: 6, kind: input, shape index: {}]
  %s7 = inlined_call_operand.hbm [shape: f32[2,1,7], index: 7, kind: output, shape index: {}]
  %s8 = sld [smem:[#allocation0]]
  $region61: #{tpu_custom_call.1} parent=0
    _
  %s10 = ssub.s32 1, %s8
  %s11 = scalar_select 0, %s10, %s8
  $region1: #{tpu_custom_call.1} parent=0
    #allocation3 [shape = 'u8[1024]{0}', space=vmem, size = 0x400, scoped, tag = 'output window, operand 0']
    #allocation4 [shape = 's32[2]{0}', space=sflag, size = 0x8, scoped, tag = 'scoped memory for tpu_custom_call.1']
    %12 = vsyncpa [#allocation4], 0
    %s13 = scalar_lea.sflag [#allocation4], 1
    %14 = vsyncpa %s13, 0
    loop: start=0, step=1, limit=4
    $region2: #{tpu_custom_call.1} parent=1 // loop_pre_header
      _
    $region3: #{tpu_custom_call.1} parent=1 // loop_header
      %s16 = sphi 0, %s20
      %p17 = scmp.ge.s32.totalorder %s16, 4
      %s26 = sphi 0, %s28
      %s29 = sphi 0, %s26
      %s30 = sphi 0, %s29
      %s46 = sphi 0, %s30
      %s50 = sphi 0, %s50
      %s52 = sphi 0, %s50
      %s53 = sphi 0, %s52
      %s67 = sphi 0, %s53
      %s71 = sphi 0, %s71
      %s73 = sphi 0, %s71
      %s74 = sphi 0, %s73
      %s88 = sphi 0, %s74
      %s92 = sphi 0, %s92
      %s94 = sphi 0, %s92
      %s95 = sphi 0, %s94
      %s109 = sphi 0, %s95
      %s113 = sphi 0, %s113
      %s115 = sphi 0, %s113
      %s116 = sphi 0, %s115
      %s130 = sphi 0, %s116
      %s134 = sphi 0, %s134
      %s136 = sphi 0, %s134
      %s137 = sphi 0, %s136
      %s151 = sphi 0, %s137
      %s155 = sphi 0, %s155
      %s157 = sphi 0, %s155
      %s158 = sphi 0, %s157
      %s172 = sphi 0, %s158
      %s178 = sphi 0, %s180
      %s181 = sphi 0, %s178
      %s182 = sphi 0, %s181
      %s198 = sphi 0, %s182
    $region4: #{tpu_custom_call.1} parent=1 // loop_header_branch
      %19 = sbr.rel (%p17) target = $region8
    $region5: #{tpu_custom_call.1} parent=1 // loop_body
      %s21 = ssub.s32 %s16, 1
      %s22 = ssub.s32 %s16, 2
      %s23 = sadd.s32 %s16, 1
      %s24 = ssub.s32 %s16, %s23
      %p25 = scmp.eq.s32.totalorder %s24, 0
      %s27 = sadd.s32 %s26, 1
      %s28 = scalar_select %p25, %s26, %s27
      %p31 = pneg %p25
      %p32 = scmp.eq.s32.totalorder %s16, 1
      %p33 = por %p31, %p32
      %p34 = scmp.ne.s32.totalorder %s26, %s29
      %p35 = scmp.eq.s32.totalorder %s16, 0
      %p36 = por %p34, %p35
      %p37 = scmp.ne.s32.totalorder %s26, %s29
      %p38 = scmp.eq.s32.totalorder %s21, 1
      %p39 = por %p37, %p38
      %p40 = scmp.ne.s32.totalorder %s29, %s30
      %p41 = scmp.eq.s32.totalorder %s21, 0
      %p42 = por %p40, %p41
      %p43 = scmp.ne.s32.totalorder %s29, %s30
      %p44 = scmp.eq.s32.totalorder %s22, 1
      %p45 = por %p43, %p44
      %p47 = scmp.ne.s32.totalorder %s30, %s46
      %p48 = scmp.eq.s32.totalorder %s22, 0
      %p49 = por %p47, %p48
      %s51 = sadd.s32 %s50, 1
      %p54 = scmp.eq.s32.totalorder %s16, 1
      %p55 = scmp.ne.s32.totalorder %s50, %s52
      %p56 = scmp.eq.s32.totalorder %s16, 0
      %p57 = por %p55, %p56
      %p58 = scmp.ne.s32.totalorder %s50, %s52
      %p59 = scmp.eq.s32.totalorder %s21, 1
      %p60 = por %p58, %p59
      %p61 = scmp.ne.s32.totalorder %s52, %s53
      %p62 = scmp.eq.s32.totalorder %s21, 0
      %p63 = por %p61, %p62
      %p64 = scmp.ne.s32.totalorder %s52, %s53
      %p65 = scmp.eq.s32.totalorder %s22, 1
      %p66 = por %p64, %p65
      %p68 = scmp.ne.s32.totalorder %s53, %s67
      %p69 = scmp.eq.s32.totalorder %s22, 0
      %p70 = por %p68, %p69
      %s72 = sadd.s32 %s71, 1
      %p75 = scmp.eq.s32.totalorder %s16, 1
      %p76 = scmp.ne.s32.totalorder %s71, %s73
      %p77 = scmp.eq.s32.totalorder %s16, 0
      %p78 = por %p76, %p77
      %p79 = scmp.ne.s32.totalorder %s71, %s73
      %p80 = scmp.eq.s32.totalorder %s21, 1
      %p81 = por %p79, %p80
      %p82 = scmp.ne.s32.totalorder %s73, %s74
      %p83 = scmp.eq.s32.totalorder %s21, 0
      %p84 = por %p82, %p83
      %p85 = scmp.ne.s32.totalorder %s73, %s74
      %p86 = scmp.eq.s32.totalorder %s22, 1
      %p87 = por %p85, %p86
      %p89 = scmp.ne.s32.totalorder %s74, %s88
      %p90 = scmp.eq.s32.totalorder %s22, 0
      %p91 = por %p89, %p90
      %s93 = sadd.s32 %s92, 1
      %p96 = scmp.eq.s32.totalorder %s16, 1
      %p97 = scmp.ne.s32.totalorder %s92, %s94
      %p98 = scmp.eq.s32.totalorder %s16, 0
      %p99 = por %p97, %p98
      %p100 = scmp.ne.s32.totalorder %s92, %s94
      %p101 = scmp.eq.s32.totalorder %s21, 1
      %p102 = por %p100, %p101
      %p103 = scmp.ne.s32.totalorder %s94, %s95
      %p104 = scmp.eq.s32.totalorder %s21, 0
      %p105 = por %p103, %p104
      %p106 = scmp.ne.s32.totalorder %s94, %s95
      %p107 = scmp.eq.s32.totalorder %s22, 1
      %p108 = por %p106, %p107
      %p110 = scmp.ne.s32.totalorder %s95, %s109
      %p111 = scmp.eq.s32.totalorder %s22, 0
      %p112 = por %p110, %p111
      %s114 = sadd.s32 %s113, 1
      %p117 = scmp.eq.s32.totalorder %s16, 1
      %p118 = scmp.ne.s32.totalorder %s113, %s115
      %p119 = scmp.eq.s32.totalorder %s16, 0
      %p120 = por %p118, %p119
      %p121 = scmp.ne.s32.totalorder %s113, %s115
      %p122 = scmp.eq.s32.totalorder %s21, 1
      %p123 = por %p121, %p122
      %p124 = scmp.ne.s32.totalorder %s115, %s116
      %p125 = scmp.eq.s32.totalorder %s21, 0
      %p126 = por %p124, %p125
      %p127 = scmp.ne.s32.totalorder %s115, %s116
      %p128 = scmp.eq.s32.totalorder %s22, 1
      %p129 = por %p127, %p128
      %p131 = scmp.ne.s32.totalorder %s116, %s130
      %p132 = scmp.eq.s32.totalorder %s22, 0
      %p133 = por %p131, %p132
      %s135 = sadd.s32 %s134, 1
      %p138 = scmp.eq.s32.totalorder %s16, 1
      %p139 = scmp.ne.s32.totalorder %s134, %s136
      %p140 = scmp.eq.s32.totalorder %s16, 0
      %p141 = por %p139, %p140
      %p142 = scmp.ne.s32.totalorder %s134, %s136
      %p143 = scmp.eq.s32.totalorder %s21, 1
      %p144 = por %p142, %p143
      %p145 = scmp.ne.s32.totalorder %s136, %s137
      %p146 = scmp.eq.s32.totalorder %s21, 0
      %p147 = por %p145, %p146
      %p148 = scmp.ne.s32.totalorder %s136, %s137
      %p149 = scmp.eq.s32.totalorder %s22, 1
      %p150 = por %p148, %p149
      %p152 = scmp.ne.s32.totalorder %s137, %s151
      %p153 = scmp.eq.s32.totalorder %s22, 0
      %p154 = por %p152, %p153
      %s156 = sadd.s32 %s155, 1
      %p159 = scmp.eq.s32.totalorder %s16, 1
      %p160 = scmp.ne.s32.totalorder %s155, %s157
      %p161 = scmp.eq.s32.totalorder %s16, 0
      %p162 = por %p160, %p161
      %p163 = scmp.ne.s32.totalorder %s155, %s157
      %p164 = scmp.eq.s32.totalorder %s21, 1
      %p165 = por %p163, %p164
      %p166 = scmp.ne.s32.totalorder %s157, %s158
      %p167 = scmp.eq.s32.totalorder %s21, 0
      %p168 = por %p166, %p167
      %p169 = scmp.ne.s32.totalorder %s157, %s158
      %p170 = scmp.eq.s32.totalorder %s22, 1
      %p171 = por %p169, %p170
      %p173 = scmp.ne.s32.totalorder %s158, %s172
      %p174 = scmp.eq.s32.totalorder %s22, 0
      %p175 = por %p173, %p174
      %s176 = ssub.s32 %s16, %s23
      %p177 = scmp.eq.s32.totalorder %s176, 0
      %s179 = sadd.s32 %s178, 1
      %s180 = scalar_select %p177, %s178, %s179
      %p183 = pneg %p177
      %p184 = scmp.eq.s32.totalorder %s16, 1
      %p185 = por %p183, %p184
      %p186 = scmp.ne.s32.totalorder %s178, %s181
      %p187 = scmp.eq.s32.totalorder %s16, 0
      %p188 = por %p186, %p187
      %p189 = scmp.ne.s32.totalorder %s178, %s181
      %p190 = scmp.eq.s32.totalorder %s21, 1
      %p191 = por %p189, %p190
      %p192 = scmp.ne.s32.totalorder %s181, %s182
      %p193 = scmp.eq.s32.totalorder %s21, 0
      %p194 = por %p192, %p193
      %p195 = scmp.ne.s32.totalorder %s181, %s182
      %p196 = scmp.eq.s32.totalorder %s22, 1
      %p197 = por %p195, %p196
      %p199 = scmp.ne.s32.totalorder %s182, %s198
      %p200 = scmp.eq.s32.totalorder %s22, 0
      %p201 = por %p199, %p200
      %p202 = scmp.le.s32.totalorder 1, %s16
      %p203 = scmp.lt.s32.totalorder %s16, 3
      %p204 = pnand %p202, %p203
      %p205 = pneg %p204
      // Predicated region
      $region9: #{tpu_custom_call.1} parent=5 // pred_check
        _
      $region10: #{tpu_custom_call.1} parent=5 // pred_check_branch
        %207 = sbr.rel (%p204) target = $region12
      $region11: #{tpu_custom_call.1} parent=5 // pred_region
        %s208 = ssub.s32 %s16, 1
        // Predicated region
        $region13: #{tpu_custom_call.1} parent=11 // pred_check
          %p209 = pneg %p63
        $region14: #{tpu_custom_call.1} parent=11 // pred_check_branch
          %211 = sbr.rel (%p209) target = $region16
        $region15: #{tpu_custom_call.1} parent=11 // pred_region
          _
        $region16: #{tpu_custom_call.1} parent=11 // pred_fallthru
          _
        // Predicated region
        $region17: #{tpu_custom_call.1} parent=11 // pred_check
          %p212 = pneg %p84
        $region18: #{tpu_custom_call.1} parent=11 // pred_check_branch
          %214 = sbr.rel (%p212) target = $region20
        $region19: #{tpu_custom_call.1} parent=11 // pred_region
          _
        $region20: #{tpu_custom_call.1} parent=11 // pred_fallthru
          _
        // Predicated region
        $region21: #{tpu_custom_call.1} parent=11 // pred_check
          %p215 = pneg %p105
        $region22: #{tpu_custom_call.1} parent=11 // pred_check_branch
          %217 = sbr.rel (%p215) target = $region24
        $region23: #{tpu_custom_call.1} parent=11 // pred_region
          _
        $region24: #{tpu_custom_call.1} parent=11 // pred_fallthru
          _
        // Predicated region
        $region25: #{tpu_custom_call.1} parent=11 // pred_check
          %p218 = pneg %p126
        $region26: #{tpu_custom_call.1} parent=11 // pred_check_branch
          %220 = sbr.rel (%p218) target = $region28
        $region27: #{tpu_custom_call.1} parent=11 // pred_region
          _
        $region28: #{tpu_custom_call.1} parent=11 // pred_fallthru
          _
        // Predicated region
        $region29: #{tpu_custom_call.1} parent=11 // pred_check
          %p221 = pneg %p147
        $region30: #{tpu_custom_call.1} parent=11 // pred_check_branch
          %223 = sbr.rel (%p221) target = $region32
        $region31: #{tpu_custom_call.1} parent=11 // pred_region
          _
        $region32: #{tpu_custom_call.1} parent=11 // pred_fallthru
          _
        // Predicated region
        $region33: #{tpu_custom_call.1} parent=11 // pred_check
          %p224 = pneg %p168
        $region34: #{tpu_custom_call.1} parent=11 // pred_check_branch
          %226 = sbr.rel (%p224) target = $region36
        $region35: #{tpu_custom_call.1} parent=11 // pred_region
          _
        $region36: #{tpu_custom_call.1} parent=11 // pred_fallthru
          _
      $region12: #{tpu_custom_call.1} parent=5 // pred_fallthru
        _
      %p227 = scmp.lt.s32.totalorder %s16, 2
      // Predicated region
      $region37: #{tpu_custom_call.1} parent=5 // pred_check
        %p228 = pneg %p227
      $region38: #{tpu_custom_call.1} parent=5 // pred_check_branch
        %230 = sbr.rel (%p228) target = $region40
      $region39: #{tpu_custom_call.1} parent=5 // pred_region
        // Predicated region
        $region41: #{tpu_custom_call.1} parent=39 // pred_check
          %p231 = pneg %p36
        $region42: #{tpu_custom_call.1} parent=39 // pred_check_branch
          %233 = sbr.rel (%p231) target = $region44
        $region43: #{tpu_custom_call.1} parent=39 // pred_region
          %p234 = scmp.lt.s32.totalorder %s16, 1
          %s235 = scalar_select %p234, %s16, 1
          %s236 = smul.addr %s235, 9
          %s237 = smul.addr %s236, 8
          %s238 = scalar_lea.vmem %s0, %s237
        $region44: #{tpu_custom_call.1} parent=39 // pred_fallthru
          _
      $region40: #{tpu_custom_call.1} parent=5 // pred_fallthru
        _
      %p239 = scmp.le.s32.totalorder 1, %s16
      %p240 = scmp.lt.s32.totalorder %s16, 3
      %p241 = pnand %p239, %p240
      %p242 = pneg %p241
      // Predicated region
      $region45: #{tpu_custom_call.1} parent=5 // pred_check
        _
      $region46: #{tpu_custom_call.1} parent=5 // pred_check_branch
        %244 = sbr.rel (%p241) target = $region48
      $region47: #{tpu_custom_call.1} parent=5 // pred_region
        %s245 = ssub.s32 %s16, 1
        %p246 = scmp.lt.s32.totalorder %s21, 1
        %s247 = scalar_select %p246, %s21, 1
        %s248 = smul.addr %s247, 9
        %s249 = smul.addr %s248, 8
        %s250 = scalar_lea.vmem %s0, %s249
        %p251 = pneg %p42
        %p252 = pneg %p39
        %p253 = pneg %p63
        %p254 = pneg %p60
        %p255 = pneg %p84
        %p256 = pneg %p81
        %p257 = pneg %p105
        %p258 = pneg %p102
        %p259 = pneg %p126
        %p260 = pneg %p123
        %p261 = pneg %p147
        %p262 = pneg %p144
        %p263 = pneg %p168
        %p264 = pneg %p165
        %p265 = pneg %p194
        %p266 = pneg %p191
        %s267 = sand.u32 %s181, 1
        %s268 = scalar_lea.sflag [#allocation4], %s267
        %s269 = sand.u32 %s181, 1
        %s270 = scalar_lea.vmem [#allocation3], %s269
        %p271 = scmp.lt.s32.totalorder %s21, 1
        %s272 = scalar_select %p271, %s21, 1
        %s273 = smul.addr %s272, 9
        %s274 = smul.addr %s273, 8
        %s275 = scalar_lea.vmem %s0, %s274
        %v276 = vld [vmem:[%s275] sm:$0xff]
        %v277 = vld [vmem:[%s275 + $0x8] sm:$0xff]
        %v278 = vld [vmem:[%s275 + $0x10] sm:$0xff]
        %v279 = vld [vmem:[%s275 + $0x18] sm:$0xff]
        %v280 = vld [vmem:[%s275 + $0x20] sm:$0xff]
        %v281 = vld [vmem:[%s275 + $0x28] sm:$0xff]
        %v282 = vld [vmem:[%s275 + $0x30] sm:$0xff]
        %v283 = vld [vmem:[%s275 + $0x38] sm:$0xff]
        %v284 = vld [vmem:[%s275 + $0x40] sm:$0x3]
        %v285 = vld [vmem:[%s6] sm:$0x1]
        %v286 = vld [vmem:[%s1] sm:$0x7]
        %s287 = scalar_lea.vmem %s1, 4
        %v288 = vld [vmem:[%s287] sm:$0x7]
        %vm298 = vcmask 1046528
        %v299 = vrot.slane %v276, 1
        %v300 = vrot.slane %v277, 1
        %v301 = vsel %vm298, %v299, %v300
        %v302 = vrot.slane %v278, 1
        %v303 = vsel %vm298, %v300, %v302
        %v304 = vrot.slane %v279, 1
        %v305 = vsel %vm298, %v302, %v304
        %v306 = vrot.slane %v280, 1
        %v307 = vsel %vm298, %v304, %v306
        %v308 = vrot.slane %v281, 1
        %v309 = vsel %vm298, %v306, %v308
        %v310 = vrot.slane %v282, 1
        %v311 = vsel %vm298, %v308, %v310
        %v312 = vrot.slane %v283, 1
        %v313 = vsel %vm298, %v310, %v312
        %v314 = vrot.slane %v284, 1
        %v315 = vsel %vm298, %v312, %v314
        %vm316 = vcmask 23552
        %v317 = vsel %vm316, %v301, 0
        %v319 = vsel %vm316, %v303, 0
        %v321 = vsel %vm316, %v305, 0
        %v323 = vsel %vm316, %v307, 0
        %v325 = vsel %vm316, %v309, 0
        %v327 = vsel %vm316, %v311, 0
        %v329 = vsel %vm316, %v313, 0
        %v331 = vsel %vm316, %v315, 0
        %vm333 = vcmask 1042432
        %v335 = vsel %vm333, %v288, 0
        %337 = vmatprep.subr.mxu0 0.0
        %338 = vmatpush1.msra.mxu0 0.0
        %339 = vmatprep.subr.mxu0 0.0
        %340 = vmatpush1.msra.mxu0 0.0
        %341 = vmatprep.subr.mxu0 0.0
        %342 = vmatpush1.msra.mxu0 0.0
        %343 = vmatprep.subr.mxu0 0.0
        %344 = vmatpush1.msra.mxu0 0.0
        %345 = vmatprep.subr.mxu0 0.0
        %346 = vmatpush1.msra.mxu0 0.0
        %347 = vmatprep.subr.mxu0 0.0
        %348 = vmatpush1.msra.mxu0 0.0
        %349 = vmatprep.subr.mxu0 0.0
        %350 = vmatpush1.msra.mxu0 0.0
        %351 = vmatprep.subr.mxu0 0.0
        %352 = vmatpush1.msra.mxu0 0.0
        %353 = vmatprep.subr.mxu0 0.0
        %354 = vmatpush1.msra.mxu0 0.0
        %355 = vmatprep.subr.mxu0 0.0
        %356 = vmatpush1.msra.mxu0 0.0
        %357 = vmatprep.subr.mxu0 0.0
        %358 = vmatpush1.msra.mxu0 0.0
        %359 = vmatprep.subr.mxu0 0.0
        %360 = vmatpush1.msra.mxu0 0.0
        %361 = vmatprep.subr.mxu0 0.0
        %362 = vmatpush1.msra.mxu0 0.0
        %363 = vmatprep.subr.mxu0 0.0
        %364 = vmatpush1.msra.mxu0 0.0
        %365 = vmatprep.subr.mxu0 0.0
        %366 = vmatpush1.msra.mxu0 0.0
        %367 = vmatprep.subr.mxu0 0.0
        %368 = vmatpush1.msra.mxu0 %v335
        %369 = vmatprep.subr.mxu0 0.0
        %370 = vmatpush2.msra.mxu0 0.0
        %371 = vmatprep.subr.mxu0 0.0
        %372 = vmatpush2.msra.mxu0 0.0
        %373 = vmatprep.subr.mxu0 0.0
        %374 = vmatpush2.msra.mxu0 0.0
        %375 = vmatprep.subr.mxu0 0.0
        %376 = vmatpush2.msra.mxu0 0.0
        %377 = vmatprep.subr.mxu0 0.0
        %378 = vmatpush2.msra.mxu0 0.0
        %379 = vmatprep.subr.mxu0 0.0
        %380 = vmatpush2.msra.mxu0 0.0
        %381 = vmatprep.subr.mxu0 0.0
        %382 = vmatpush2.msra.mxu0 0.0
        %383 = vmatprep.subr.mxu0 0.0
        %384 = vmatpush2.msra.mxu0 0.0
        %385 = vmatprep.subr.mxu0 0.0
        %386 = vmatpush2.msra.mxu0 0.0
        %387 = vmatprep.subr.mxu0 0.0
        %388 = vmatpush2.msra.mxu0 0.0
        %389 = vmatprep.subr.mxu0 0.0
        %390 = vmatpush2.msra.mxu0 0.0
        %391 = vmatprep.subr.mxu0 0.0
        %392 = vmatpush2.msra.mxu0 0.0
        %393 = vmatprep.subr.mxu0 0.0
        %394 = vmatpush2.msra.mxu0 0.0
        %395 = vmatprep.subr.mxu0 0.0
        %396 = vmatpush2.msra.mxu0 0.0
        %397 = vmatprep.subr.mxu0 0.0
        %398 = vmatpush2.msra.mxu0 0.0
        %399 = vmatprep.subr.mxu0 0.0
        %400 = vmatpush2.msra.mxu0 0.0
        %401 = vmatprep.mubr.f32.mxu0 0.0
        %402 = vmatmul.mubr.f32.gmra.mxu0 %v317
        %v403 = vpop.f32.mrf.mxu0
        %v404 = vadd.f32 0.0, %v403
        %v405 = vpop.f32.mrf.mxu0
        %406 = vmatprep.mubr.f32.mxu0 0.0
        %407 = vmatmul.mubr.f32.gmra.mxu0 %v319
        %v408 = vpop.f32.mrf.mxu0
        %v409 = vadd.f32 0.0, %v408
        %v410 = vpop.f32.mrf.mxu0
        %411 = vmatprep.mubr.f32.mxu0 0.0
        %412 = vmatmul.mubr.f32.gmra.mxu0 %v321
        %v413 = vpop.f32.mrf.mxu0
        %v414 = vadd.f32 0.0, %v413
        %v415 = vpop.f32.mrf.mxu0
        %416 = vmatprep.mubr.f32.mxu0 0.0
        %417 = vmatmul.mubr.f32.gmra.mxu0 %v323
        %v418 = vpop.f32.mrf.mxu0
        %v419 = vadd.f32 0.0, %v418
        %v420 = vpop.f32.mrf.mxu0
        %421 = vmatprep.mubr.f32.mxu0 0.0
        %422 = vmatmul.mubr.f32.gmra.mxu0 %v325
        %v423 = vpop.f32.mrf.mxu0
        %v424 = vadd.f32 0.0, %v423
        %v425 = vpop.f32.mrf.mxu0
        %426 = vmatprep.mubr.f32.mxu0 0.0
        %427 = vmatmul.mubr.f32.gmra.mxu0 %v327
        %v428 = vpop.f32.mrf.mxu0
        %v429 = vadd.f32 0.0, %v428
        %v430 = vpop.f32.mrf.mxu0
        %431 = vmatprep.mubr.f32.mxu0 0.0
        %432 = vmatmul.mubr.f32.gmra.mxu0 %v329
        %v433 = vpop.f32.mrf.mxu0
        %v434 = vadd.f32 0.0, %v433
        %v435 = vpop.f32.mrf.mxu0
        %436 = vmatprep.mubr.f32.mxu0 0.0
        %437 = vmatmul.mubr.f32.gmra.mxu0 %v331
        %v438 = vpop.f32.mrf.mxu0
        %v439 = vadd.f32 0.0, %v438
        %v440 = vpop.f32.mrf.mxu0
        %441 = vdwg.mxu0
        %v442 = vsel %vm316, %v276, 0
        %v444 = vsel %vm316, %v277, 0
        %v446 = vsel %vm316, %v278, 0
        %v448 = vsel %vm316, %v279, 0
        %v450 = vsel %vm316, %v280, 0
        %v452 = vsel %vm316, %v281, 0
        %v454 = vsel %vm316, %v282, 0
        %v456 = vsel %vm316, %v283, 0
        %v459 = vsel %vm333, %v286, 0
        %461 = vmatprep.subr.mxu0 0.0
        %462 = vmatpush1.msra.mxu0 0.0
        %463 = vmatprep.subr.mxu0 0.0
        %464 = vmatpush1.msra.mxu0 0.0
        %465 = vmatprep.subr.mxu0 0.0
        %466 = vmatpush1.msra.mxu0 0.0
        %467 = vmatprep.subr.mxu0 0.0
        %468 = vmatpush1.msra.mxu0 0.0
        %469 = vmatprep.subr.mxu0 0.0
        %470 = vmatpush1.msra.mxu0 0.0
        %471 = vmatprep.subr.mxu0 0.0
        %472 = vmatpush1.msra.mxu0 0.0
        %473 = vmatprep.subr.mxu0 0.0
        %474 = vmatpush1.msra.mxu0 0.0
        %475 = vmatprep.subr.mxu0 0.0
        %476 = vmatpush1.msra.mxu0 0.0
        %477 = vmatprep.subr.mxu0 0.0
        %478 = vmatpush1.msra.mxu0 0.0
        %479 = vmatprep.subr.mxu0 0.0
        %480 = vmatpush1.msra.mxu0 0.0
        %481 = vmatprep.subr.mxu0 0.0
        %482 = vmatpush1.msra.mxu0 0.0
        %483 = vmatprep.subr.mxu0 0.0
        %484 = vmatpush1.msra.mxu0 0.0
        %485 = vmatprep.subr.mxu0 0.0
        %486 = vmatpush1.msra.mxu0 0.0
        %487 = vmatprep.subr.mxu0 0.0
        %488 = vmatpush1.msra.mxu0 0.0
        %489 = vmatprep.subr.mxu0 0.0
        %490 = vmatpush1.msra.mxu0 0.0
        %491 = vmatprep.subr.mxu0 0.0
        %492 = vmatpush1.msra.mxu0 %v459
        %493 = vmatprep.subr.mxu0 0.0
        %494 = vmatpush2.msra.mxu0 0.0
        %495 = vmatprep.subr.mxu0 0.0
        %496 = vmatpush2.msra.mxu0 0.0
        %497 = vmatprep.subr.mxu0 0.0
        %498 = vmatpush2.msra.mxu0 0.0
        %499 = vmatprep.subr.mxu0 0.0
        %500 = vmatpush2.msra.mxu0 0.0
        %501 = vmatprep.subr.mxu0 0.0
        %502 = vmatpush2.msra.mxu0 0.0
        %503 = vmatprep.subr.mxu0 0.0
        %504 = vmatpush2.msra.mxu0 0.0
        %505 = vmatprep.subr.mxu0 0.0
        %506 = vmatpush2.msra.mxu0 0.0
        %507 = vmatprep.subr.mxu0 0.0
        %508 = vmatpush2.msra.mxu0 0.0
        %509 = vmatprep.subr.mxu0 0.0
        %510 = vmatpush2.msra.mxu0 0.0
        %511 = vmatprep.subr.mxu0 0.0
        %512 = vmatpush2.msra.mxu0 0.0
        %513 = vmatprep.subr.mxu0 0.0
        %514 = vmatpush2.msra.mxu0 0.0
        %515 = vmatprep.subr.mxu0 0.0
        %516 = vmatpush2.msra.mxu0 0.0
        %517 = vmatprep.subr.mxu0 0.0
        %518 = vmatpush2.msra.mxu0 0.0
        %519 = vmatprep.subr.mxu0 0.0
        %520 = vmatpush2.msra.mxu0 0.0
        %521 = vmatprep.subr.mxu0 0.0
        %522 = vmatpush2.msra.mxu0 0.0
        %523 = vmatprep.subr.mxu0 0.0
        %524 = vmatpush2.msra.mxu0 0.0
        %525 = vmatprep.mubr.f32.mxu0 0.0
        %526 = vmatmul.mubr.f32.gmra.mxu0 %v442
        %v527 = vpop.f32.mrf.mxu0
        %v528 = vadd.f32 %v404, %v527
        %v529 = vpop.f32.mrf.mxu0
        %530 = vmatprep.mubr.f32.mxu0 0.0
        %531 = vmatmul.mubr.f32.gmra.mxu0 %v444
        %v532 = vpop.f32.mrf.mxu0
        %v533 = vadd.f32 %v409, %v532
        %v534 = vpop.f32.mrf.mxu0
        %535 = vmatprep.mubr.f32.mxu0 0.0
        %536 = vmatmul.mubr.f32.gmra.mxu0 %v446
        %v537 = vpop.f32.mrf.mxu0
        %v538 = vadd.f32 %v414, %v537
        %v539 = vpop.f32.mrf.mxu0
        %540 = vmatprep.mubr.f32.mxu0 0.0
        %541 = vmatmul.mubr.f32.gmra.mxu0 %v448
        %v542 = vpop.f32.mrf.mxu0
        %v543 = vadd.f32 %v419, %v542
        %v544 = vpop.f32.mrf.mxu0
        %545 = vmatprep.mubr.f32.mxu0 0.0
        %546 = vmatmul.mubr.f32.gmra.mxu0 %v450
        %v547 = vpop.f32.mrf.mxu0
        %v548 = vadd.f32 %v424, %v547
        %v549 = vpop.f32.mrf.mxu0
        %550 = vmatprep.mubr.f32.mxu0 0.0
        %551 = vmatmul.mubr.f32.gmra.mxu0 %v452
        %v552 = vpop.f32.mrf.mxu0
        %v553 = vadd.f32 %v429, %v552
        %v554 = vpop.f32.mrf.mxu0
        %555 = vmatprep.mubr.f32.mxu0 0.0
        %556 = vmatmul.mubr.f32.gmra.mxu0 %v454
        %v557 = vpop.f32.mrf.mxu0
        %v558 = vadd.f32 %v434, %v557
        %v559 = vpop.f32.mrf.mxu0
        %560 = vmatprep.mubr.f32.mxu0 0.0
        %561 = vmatmul.mubr.f32.gmra.mxu0 %v456
        %v562 = vpop.f32.mrf.mxu0
        %v563 = vadd.f32 %v439, %v562
        %v564 = vpop.f32.mrf.mxu0
        %565 = vdwg.mxu0
        %s566 = scalar_lea.vmem %s1, 8
        %v567 = vld [vmem:[%s566] sm:$0x7]
        %vm568 = vcmask 1045504
        %v569 = vrot.slane %v276, 2
        %v570 = vrot.slane %v277, 2
        %v571 = vsel %vm568, %v569, %v570
        %v572 = vrot.slane %v278, 2
        %v573 = vsel %vm568, %v570, %v572
        %v574 = vrot.slane %v279, 2
        %v575 = vsel %vm568, %v572, %v574
        %v576 = vrot.slane %v280, 2
        %v577 = vsel %vm568, %v574, %v576
        %v578 = vrot.slane %v281, 2
        %v579 = vsel %vm568, %v576, %v578
        %v580 = vrot.slane %v282, 2
        %v581 = vsel %vm568, %v578, %v580
        %v582 = vrot.slane %v283, 2
        %v583 = vsel %vm568, %v580, %v582
        %v584 = vrot.slane %v284, 2
        %v585 = vsel %vm568, %v582, %v584
        %v586 = vsel %vm316, %v571, 0
        %v588 = vsel %vm316, %v573, 0
        %v590 = vsel %vm316, %v575, 0
        %v592 = vsel %vm316, %v577, 0
        %v594 = vsel %vm316, %v579, 0
        %v596 = vsel %vm316, %v581, 0
        %v598 = vsel %vm316, %v583, 0
        %v600 = vsel %vm316, %v585, 0
        %v603 = vsel %vm333, %v567, 0
        %605 = vmatprep.subr.mxu0 0.0
        %606 = vmatpush1.msra.mxu0 0.0
        %607 = vmatprep.subr.mxu0 0.0
        %608 = vmatpush1.msra.mxu0 0.0
        %609 = vmatprep.subr.mxu0 0.0
        %610 = vmatpush1.msra.mxu0 0.0
        %611 = vmatprep.subr.mxu0 0.0
        %612 = vmatpush1.msra.mxu0 0.0
        %613 = vmatprep.subr.mxu0 0.0
        %614 = vmatpush1.msra.mxu0 0.0
        %615 = vmatprep.subr.mxu0 0.0
        %616 = vmatpush1.msra.mxu0 0.0
        %617 = vmatprep.subr.mxu0 0.0
        %618 = vmatpush1.msra.mxu0 0.0
        %619 = vmatprep.subr.mxu0 0.0
        %620 = vmatpush1.msra.mxu0 0.0
        %621 = vmatprep.subr.mxu0 0.0
        %622 = vmatpush1.msra.mxu0 0.0
        %623 = vmatprep.subr.mxu0 0.0
        %624 = vmatpush1.msra.mxu0 0.0
        %625 = vmatprep.subr.mxu0 0.0
        %626 = vmatpush1.msra.mxu0 0.0
        %627 = vmatprep.subr.mxu0 0.0
        %628 = vmatpush1.msra.mxu0 0.0
        %629 = vmatprep.subr.mxu0 0.0
        %630 = vmatpush1.msra.mxu0 0.0
        %631 = vmatprep.subr.mxu0 0.0
        %632 = vmatpush1.msra.mxu0 0.0
        %633 = vmatprep.subr.mxu0 0.0
        %634 = vmatpush1.msra.mxu0 0.0
        %635 = vmatprep.subr.mxu0 0.0
        %636 = vmatpush1.msra.mxu0 %v603
        %637 = vmatprep.subr.mxu0 0.0
        %638 = vmatpush2.msra.mxu0 0.0
        %639 = vmatprep.subr.mxu0 0.0
        %640 = vmatpush2.msra.mxu0 0.0
        %641 = vmatprep.subr.mxu0 0.0
        %642 = vmatpush2.msra.mxu0 0.0
        %643 = vmatprep.subr.mxu0 0.0
        %644 = vmatpush2.msra.mxu0 0.0
        %645 = vmatprep.subr.mxu0 0.0
        %646 = vmatpush2.msra.mxu0 0.0
        %647 = vmatprep.subr.mxu0 0.0
        %648 = vmatpush2.msra.mxu0 0.0
        %649 = vmatprep.subr.mxu0 0.0
        %650 = vmatpush2.msra.mxu0 0.0
        %651 = vmatprep.subr.mxu0 0.0
        %652 = vmatpush2.msra.mxu0 0.0
        %653 = vmatprep.subr.mxu0 0.0
        %654 = vmatpush2.msra.mxu0 0.0
        %655 = vmatprep.subr.mxu0 0.0
        %656 = vmatpush2.msra.mxu0 0.0
        %657 = vmatprep.subr.mxu0 0.0
        %658 = vmatpush2.msra.mxu0 0.0
        %659 = vmatprep.subr.mxu0 0.0
        %660 = vmatpush2.msra.mxu0 0.0
        %661 = vmatprep.subr.mxu0 0.0
        %662 = vmatpush2.msra.mxu0 0.0
        %663 = vmatprep.subr.mxu0 0.0
        %664 = vmatpush2.msra.mxu0 0.0
        %665 = vmatprep.subr.mxu0 0.0
        %666 = vmatpush2.msra.mxu0 0.0
        %667 = vmatprep.subr.mxu0 0.0
        %668 = vmatpush2.msra.mxu0 0.0
        %669 = vmatprep.mubr.f32.mxu0 0.0
        %670 = vmatmul.mubr.f32.gmra.mxu0 %v586
        %v671 = vpop.f32.mrf.mxu0
        %v672 = vadd.f32 0.0, %v671
        %v673 = vpop.f32.mrf.mxu0
        %674 = vmatprep.mubr.f32.mxu0 0.0
        %675 = vmatmul.mubr.f32.gmra.mxu0 %v588
        %v676 = vpop.f32.mrf.mxu0
        %v677 = vadd.f32 0.0, %v676
        %v678 = vpop.f32.mrf.mxu0
        %679 = vmatprep.mubr.f32.mxu0 0.0
        %680 = vmatmul.mubr.f32.gmra.mxu0 %v590
        %v681 = vpop.f32.mrf.mxu0
        %v682 = vadd.f32 0.0, %v681
        %v683 = vpop.f32.mrf.mxu0
        %684 = vmatprep.mubr.f32.mxu0 0.0
        %685 = vmatmul.mubr.f32.gmra.mxu0 %v592
        %v686 = vpop.f32.mrf.mxu0
        %v687 = vadd.f32 0.0, %v686
        %v688 = vpop.f32.mrf.mxu0
        %689 = vmatprep.mubr.f32.mxu0 0.0
        %690 = vmatmul.mubr.f32.gmra.mxu0 %v594
        %v691 = vpop.f32.mrf.mxu0
        %v692 = vadd.f32 0.0, %v691
        %v693 = vpop.f32.mrf.mxu0
        %694 = vmatprep.mubr.f32.mxu0 0.0
        %695 = vmatmul.mubr.f32.gmra.mxu0 %v596
        %v696 = vpop.f32.mrf.mxu0
        %v697 = vadd.f32 0.0, %v696
        %v698 = vpop.f32.mrf.mxu0
        %699 = vmatprep.mubr.f32.mxu0 0.0
        %700 = vmatmul.mubr.f32.gmra.mxu0 %v598
        %v701 = vpop.f32.mrf.mxu0
        %v702 = vadd.f32 0.0, %v701
        %v703 = vpop.f32.mrf.mxu0
        %704 = vmatprep.mubr.f32.mxu0 0.0
        %705 = vmatmul.mubr.f32.gmra.mxu0 %v600
        %v706 = vpop.f32.mrf.mxu0
        %v707 = vadd.f32 0.0, %v706
        %v708 = vpop.f32.mrf.mxu0
        %709 = vdwg.mxu0
        %v710 = vadd.f32 %v528, %v672
        %v711 = vadd.f32 %v533, %v677
        %v712 = vadd.f32 %v538, %v682
        %v713 = vadd.f32 %v543, %v687
        %v714 = vadd.f32 %v548, %v692
        %v715 = vadd.f32 %v553, %v697
        %v716 = vadd.f32 %v558, %v702
        %v717 = vadd.f32 %v563, %v707
        %v718 = vlaneseq
        %v719 = vshrl.u32 %v718, 7
        %v720 = vsub.s32 0, %v719
        %v721 = vrot.slane %v285, %v720
        %v722 = vadd.f32 %v710, %v721
        %v723 = vadd.f32 %v711, %v721
        %v724 = vadd.f32 %v712, %v721
        %v725 = vadd.f32 %v713, %v721
        %v726 = vadd.f32 %v714, %v721
        %v727 = vadd.f32 %v715, %v721
        %v728 = vadd.f32 %v716, %v721
        %v729 = vadd.f32 %v717, %v721
        %v730 = vmax.f32 %v722, 0.0
        %v731 = vmax.f32 %v723, 0.0
        %v732 = vmax.f32 %v724, 0.0
        %v733 = vmax.f32 %v725, 0.0
        %v734 = vmax.f32 %v726, 0.0
        %v735 = vmax.f32 %v727, 0.0
        %v736 = vmax.f32 %v728, 0.0
        %v737 = vmax.f32 %v729, 0.0
        %v738 = vld [vmem:[%s6 + $0x1] sm:$0x1]
        %v739 = vld [vmem:[%s2] sm:$0xf]
        %s740 = scalar_lea.vmem %s2, 4
        %v741 = vld [vmem:[%s740] sm:$0xf]
        %v750 = vrot.slane %v730, 1
        %v751 = vrot.slane %v731, 1
        %v752 = vsel %vm298, %v750, %v751
        %v753 = vrot.slane %v732, 1
        %v754 = vsel %vm298, %v751, %v753
        %v755 = vrot.slane %v733, 1
        %v756 = vsel %vm298, %v753, %v755
        %v757 = vrot.slane %v734, 1
        %v758 = vsel %vm298, %v755, %v757
        %v759 = vrot.slane %v735, 1
        %v760 = vsel %vm298, %v757, %v759
        %v761 = vrot.slane %v736, 1
        %v762 = vsel %vm298, %v759, %v761
        %v763 = vrot.slane %v737, 1
        %v764 = vsel %vm298, %v761, %v763
        %vm765 = vcmask 31744
        %v766 = vsel %vm765, %v752, 0
        %v768 = vsel %vm765, %v754, 0
        %v770 = vsel %vm765, %v756, 0
        %v772 = vsel %vm765, %v758, 0
        %v774 = vsel %vm765, %v760, 0
        %v776 = vsel %vm765, %v762, 0
        %v778 = vsel %vm765, %v764, 0
        %v780 = vsel %vm765, %v763, 0
        %vm782 = vcmask 1043456
        %v784 = vsel %vm782, %v741, 0
        %786 = vmatprep.subr.mxu0 0.0
        %787 = vmatpush1.msra.mxu0 0.0
        %788 = vmatprep.subr.mxu0 0.0
        %789 = vmatpush1.msra.mxu0 0.0
        %790 = vmatprep.subr.mxu0 0.0
        %791 = vmatpush1.msra.mxu0 0.0
        %792 = vmatprep.subr.mxu0 0.0
        %793 = vmatpush1.msra.mxu0 0.0
        %794 = vmatprep.subr.mxu0 0.0
        %795 = vmatpush1.msra.mxu0 0.0
        %796 = vmatprep.subr.mxu0 0.0
        %797 = vmatpush1.msra.mxu0 0.0
        %798 = vmatprep.subr.mxu0 0.0
        %799 = vmatpush1.msra.mxu0 0.0
        %800 = vmatprep.subr.mxu0 0.0
        %801 = vmatpush1.msra.mxu0 0.0
        %802 = vmatprep.subr.mxu0 0.0
        %803 = vmatpush1.msra.mxu0 0.0
        %804 = vmatprep.subr.mxu0 0.0
        %805 = vmatpush1.msra.mxu0 0.0
        %806 = vmatprep.subr.mxu0 0.0
        %807 = vmatpush1.msra.mxu0 0.0
        %808 = vmatprep.subr.mxu0 0.0
        %809 = vmatpush1.msra.mxu0 0.0
        %810 = vmatprep.subr.mxu0 0.0
        %811 = vmatpush1.msra.mxu0 0.0
        %812 = vmatprep.subr.mxu0 0.0
        %813 = vmatpush1.msra.mxu0 0.0
        %814 = vmatprep.subr.mxu0 0.0
        %815 = vmatpush1.msra.mxu0 0.0
        %816 = vmatprep.subr.mxu0 0.0
        %817 = vmatpush1.msra.mxu0 %v784
        %818 = vmatprep.subr.mxu0 0.0
        %819 = vmatpush2.msra.mxu0 0.0
        %820 = vmatprep.subr.mxu0 0.0
        %821 = vmatpush2.msra.mxu0 0.0
        %822 = vmatprep.subr.mxu0 0.0
        %823 = vmatpush2.msra.mxu0 0.0
        %824 = vmatprep.subr.mxu0 0.0
        %825 = vmatpush2.msra.mxu0 0.0
        %826 = vmatprep.subr.mxu0 0.0
        %827 = vmatpush2.msra.mxu0 0.0
        %828 = vmatprep.subr.mxu0 0.0
        %829 = vmatpush2.msra.mxu0 0.0
        %830 = vmatprep.subr.mxu0 0.0
        %831 = vmatpush2.msra.mxu0 0.0
        %832 = vmatprep.subr.mxu0 0.0
        %833 = vmatpush2.msra.mxu0 0.0
        %834 = vmatprep.subr.mxu0 0.0
        %835 = vmatpush2.msra.mxu0 0.0
        %836 = vmatprep.subr.mxu0 0.0
        %837 = vmatpush2.msra.mxu0 0.0
        %838 = vmatprep.subr.mxu0 0.0
        %839 = vmatpush2.msra.mxu0 0.0
        %840 = vmatprep.subr.mxu0 0.0
        %841 = vmatpush2.msra.mxu0 0.0
        %842 = vmatprep.subr.mxu0 0.0
        %843 = vmatpush2.msra.mxu0 0.0
        %844 = vmatprep.subr.mxu0 0.0
        %845 = vmatpush2.msra.mxu0 0.0
        %846 = vmatprep.subr.mxu0 0.0
        %847 = vmatpush2.msra.mxu0 0.0
        %848 = vmatprep.subr.mxu0 0.0
        %849 = vmatpush2.msra.mxu0 0.0
        %850 = vmatprep.mubr.f32.mxu0 0.0
        %851 = vmatmul.mubr.f32.gmra.mxu0 %v766
        %v852 = vpop.f32.mrf.mxu0
        %v853 = vadd.f32 0.0, %v852
        %v854 = vpop.f32.mrf.mxu0
        %855 = vmatprep.mubr.f32.mxu0 0.0
        %856 = vmatmul.mubr.f32.gmra.mxu0 %v768
        %v857 = vpop.f32.mrf.mxu0
        %v858 = vadd.f32 0.0, %v857
        %v859 = vpop.f32.mrf.mxu0
        %860 = vmatprep.mubr.f32.mxu0 0.0
        %861 = vmatmul.mubr.f32.gmra.mxu0 %v770
        %v862 = vpop.f32.mrf.mxu0
        %v863 = vadd.f32 0.0, %v862
        %v864 = vpop.f32.mrf.mxu0
        %865 = vmatprep.mubr.f32.mxu0 0.0
        %866 = vmatmul.mubr.f32.gmra.mxu0 %v772
        %v867 = vpop.f32.mrf.mxu0
        %v868 = vadd.f32 0.0, %v867
        %v869 = vpop.f32.mrf.mxu0
        %870 = vmatprep.mubr.f32.mxu0 0.0
        %871 = vmatmul.mubr.f32.gmra.mxu0 %v774
        %v872 = vpop.f32.mrf.mxu0
        %v873 = vadd.f32 0.0, %v872
        %v874 = vpop.f32.mrf.mxu0
        %875 = vmatprep.mubr.f32.mxu0 0.0
        %876 = vmatmul.mubr.f32.gmra.mxu0 %v776
        %v877 = vpop.f32.mrf.mxu0
        %v878 = vadd.f32 0.0, %v877
        %v879 = vpop.f32.mrf.mxu0
        %880 = vmatprep.mubr.f32.mxu0 0.0
        %881 = vmatmul.mubr.f32.gmra.mxu0 %v778
        %v882 = vpop.f32.mrf.mxu0
        %v883 = vadd.f32 0.0, %v882
        %v884 = vpop.f32.mrf.mxu0
        %885 = vmatprep.mubr.f32.mxu0 0.0
        %886 = vmatmul.mubr.f32.gmra.mxu0 %v780
        %v887 = vpop.f32.mrf.mxu0
        %v888 = vadd.f32 0.0, %v887
        %v889 = vpop.f32.mrf.mxu0
        %890 = vdwg.mxu0
        %v891 = vsel %vm765, %v730, 0
        %v893 = vsel %vm765, %v731, 0
        %v895 = vsel %vm765, %v732, 0
        %v897 = vsel %vm765, %v733, 0
        %v899 = vsel %vm765, %v734, 0
        %v901 = vsel %vm765, %v735, 0
        %v903 = vsel %vm765, %v736, 0
        %v905 = vsel %vm765, %v737, 0
        %v908 = vsel %vm782, %v739, 0
        %910 = vmatprep.subr.mxu0 0.0
        %911 = vmatpush1.msra.mxu0 0.0
        %912 = vmatprep.subr.mxu0 0.0
        %913 = vmatpush1.msra.mxu0 0.0
        %914 = vmatprep.subr.mxu0 0.0
        %915 = vmatpush1.msra.mxu0 0.0
        %916 = vmatprep.subr.mxu0 0.0
        %917 = vmatpush1.msra.mxu0 0.0
        %918 = vmatprep.subr.mxu0 0.0
        %919 = vmatpush1.msra.mxu0 0.0
        %920 = vmatprep.subr.mxu0 0.0
        %921 = vmatpush1.msra.mxu0 0.0
        %922 = vmatprep.subr.mxu0 0.0
        %923 = vmatpush1.msra.mxu0 0.0
        %924 = vmatprep.subr.mxu0 0.0
        %925 = vmatpush1.msra.mxu0 0.0
        %926 = vmatprep.subr.mxu0 0.0
        %927 = vmatpush1.msra.mxu0 0.0
        %928 = vmatprep.subr.mxu0 0.0
        %929 = vmatpush1.msra.mxu0 0.0
        %930 = vmatprep.subr.mxu0 0.0
        %931 = vmatpush1.msra.mxu0 0.0
        %932 = vmatprep.subr.mxu0 0.0
        %933 = vmatpush1.msra.mxu0 0.0
        %934 = vmatprep.subr.mxu0 0.0
        %935 = vmatpush1.msra.mxu0 0.0
        %936 = vmatprep.subr.mxu0 0.0
        %937 = vmatpush1.msra.mxu0 0.0
        %938 = vmatprep.subr.mxu0 0.0
        %939 = vmatpush1.msra.mxu0 0.0
        %940 = vmatprep.subr.mxu0 0.0
        %941 = vmatpush1.msra.mxu0 %v908
        %942 = vmatprep.subr.mxu0 0.0
        %943 = vmatpush2.msra.mxu0 0.0
        %944 = vmatprep.subr.mxu0 0.0
        %945 = vmatpush2.msra.mxu0 0.0
        %946 = vmatprep.subr.mxu0 0.0
        %947 = vmatpush2.msra.mxu0 0.0
        %948 = vmatprep.subr.mxu0 0.0
        %949 = vmatpush2.msra.mxu0 0.0
        %950 = vmatprep.subr.mxu0 0.0
        %951 = vmatpush2.msra.mxu0 0.0
        %952 = vmatprep.subr.mxu0 0.0
        %953 = vmatpush2.msra.mxu0 0.0
        %954 = vmatprep.subr.mxu0 0.0
        %955 = vmatpush2.msra.mxu0 0.0
        %956 = vmatprep.subr.mxu0 0.0
        %957 = vmatpush2.msra.mxu0 0.0
        %958 = vmatprep.subr.mxu0 0.0
        %959 = vmatpush2.msra.mxu0 0.0
        %960 = vmatprep.subr.mxu0 0.0
        %961 = vmatpush2.msra.mxu0 0.0
        %962 = vmatprep.subr.mxu0 0.0
        %963 = vmatpush2.msra.mxu0 0.0
        %964 = vmatprep.subr.mxu0 0.0
        %965 = vmatpush2.msra.mxu0 0.0
        %966 = vmatprep.subr.mxu0 0.0
        %967 = vmatpush2.msra.mxu0 0.0
        %968 = vmatprep.subr.mxu0 0.0
        %969 = vmatpush2.msra.mxu0 0.0
        %970 = vmatprep.subr.mxu0 0.0
        %971 = vmatpush2.msra.mxu0 0.0
        %972 = vmatprep.subr.mxu0 0.0
        %973 = vmatpush2.msra.mxu0 0.0
        %974 = vmatprep.mubr.f32.mxu0 0.0
        %975 = vmatmul.mubr.f32.gmra.mxu0 %v891
        %v976 = vpop.f32.mrf.mxu0
        %v977 = vadd.f32 %v853, %v976
        %v978 = vpop.f32.mrf.mxu0
        %979 = vmatprep.mubr.f32.mxu0 0.0
        %980 = vmatmul.mubr.f32.gmra.mxu0 %v893
        %v981 = vpop.f32.mrf.mxu0
        %v982 = vadd.f32 %v858, %v981
        %v983 = vpop.f32.mrf.mxu0
        %984 = vmatprep.mubr.f32.mxu0 0.0
        %985 = vmatmul.mubr.f32.gmra.mxu0 %v895
        %v986 = vpop.f32.mrf.mxu0
        %v987 = vadd.f32 %v863, %v986
        %v988 = vpop.f32.mrf.mxu0
        %989 = vmatprep.mubr.f32.mxu0 0.0
        %990 = vmatmul.mubr.f32.gmra.mxu0 %v897
        %v991 = vpop.f32.mrf.mxu0
        %v992 = vadd.f32 %v868, %v991
        %v993 = vpop.f32.mrf.mxu0
        %994 = vmatprep.mubr.f32.mxu0 0.0
        %995 = vmatmul.mubr.f32.gmra.mxu0 %v899
        %v996 = vpop.f32.mrf.mxu0
        %v997 = vadd.f32 %v873, %v996
        %v998 = vpop.f32.mrf.mxu0
        %999 = vmatprep.mubr.f32.mxu0 0.0
        %1000 = vmatmul.mubr.f32.gmra.mxu0 %v901
        %v1001 = vpop.f32.mrf.mxu0
        %v1002 = vadd.f32 %v878, %v1001
        %v1003 = vpop.f32.mrf.mxu0
        %1004 = vmatprep.mubr.f32.mxu0 0.0
        %1005 = vmatmul.mubr.f32.gmra.mxu0 %v903
        %v1006 = vpop.f32.mrf.mxu0
        %v1007 = vadd.f32 %v883, %v1006
        %v1008 = vpop.f32.mrf.mxu0
        %1009 = vmatprep.mubr.f32.mxu0 0.0
        %1010 = vmatmul.mubr.f32.gmra.mxu0 %v905
        %v1011 = vpop.f32.mrf.mxu0
        %v1012 = vadd.f32 %v888, %v1011
        %v1013 = vpop.f32.mrf.mxu0
        %1014 = vdwg.mxu0
        %s1015 = scalar_lea.vmem %s2, 8
        %v1016 = vld [vmem:[%s1015] sm:$0xf]
        %v1017 = vrot.slane %v730, 2
        %v1018 = vrot.slane %v731, 2
        %v1019 = vsel %vm568, %v1017, %v1018
        %v1020 = vrot.slane %v732, 2
        %v1021 = vsel %vm568, %v1018, %v1020
        %v1022 = vrot.slane %v733, 2
        %v1023 = vsel %vm568, %v1020, %v1022
        %v1024 = vrot.slane %v734, 2
        %v1025 = vsel %vm568, %v1022, %v1024
        %v1026 = vrot.slane %v735, 2
        %v1027 = vsel %vm568, %v1024, %v1026
        %v1028 = vrot.slane %v736, 2
        %v1029 = vsel %vm568, %v1026, %v1028
        %v1030 = vrot.slane %v737, 2
        %v1031 = vsel %vm568, %v1028, %v1030
        %v1032 = vsel %vm765, %v1019, 0
        %v1034 = vsel %vm765, %v1021, 0
        %v1036 = vsel %vm765, %v1023, 0
        %v1038 = vsel %vm765, %v1025, 0
        %v1040 = vsel %vm765, %v1027, 0
        %v1042 = vsel %vm765, %v1029, 0
        %v1044 = vsel %vm765, %v1031, 0
        %v1046 = vsel %vm765, %v1030, 0
        %v1049 = vsel %vm782, %v1016, 0
        %1051 = vmatprep.subr.mxu0 0.0
        %1052 = vmatpush1.msra.mxu0 0.0
        %1053 = vmatprep.subr.mxu0 0.0
        %1054 = vmatpush1.msra.mxu0 0.0
        %1055 = vmatprep.subr.mxu0 0.0
        %1056 = vmatpush1.msra.mxu0 0.0
        %1057 = vmatprep.subr.mxu0 0.0
        %1058 = vmatpush1.msra.mxu0 0.0
        %1059 = vmatprep.subr.mxu0 0.0
        %1060 = vmatpush1.msra.mxu0 0.0
        %1061 = vmatprep.subr.mxu0 0.0
        %1062 = vmatpush1.msra.mxu0 0.0
        %1063 = vmatprep.subr.mxu0 0.0
        %1064 = vmatpush1.msra.mxu0 0.0
        %1065 = vmatprep.subr.mxu0 0.0
        %1066 = vmatpush1.msra.mxu0 0.0
        %1067 = vmatprep.subr.mxu0 0.0
        %1068 = vmatpush1.msra.mxu0 0.0
        %1069 = vmatprep.subr.mxu0 0.0
        %1070 = vmatpush1.msra.mxu0 0.0
        %1071 = vmatprep.subr.mxu0 0.0
        %1072 = vmatpush1.msra.mxu0 0.0
        %1073 = vmatprep.subr.mxu0 0.0
        %1074 = vmatpush1.msra.mxu0 0.0
        %1075 = vmatprep.subr.mxu0 0.0
        %1076 = vmatpush1.msra.mxu0 0.0
        %1077 = vmatprep.subr.mxu0 0.0
        %1078 = vmatpush1.msra.mxu0 0.0
        %1079 = vmatprep.subr.mxu0 0.0
        %1080 = vmatpush1.msra.mxu0 0.0
        %1081 = vmatprep.subr.mxu0 0.0
        %1082 = vmatpush1.msra.mxu0 %v1049
        %1083 = vmatprep.subr.mxu0 0.0
        %1084 = vmatpush2.msra.mxu0 0.0
        %1085 = vmatprep.subr.mxu0 0.0
        %1086 = vmatpush2.msra.mxu0 0.0
        %1087 = vmatprep.subr.mxu0 0.0
        %1088 = vmatpush2.msra.mxu0 0.0
        %1089 = vmatprep.subr.mxu0 0.0
        %1090 = vmatpush2.msra.mxu0 0.0
        %1091 = vmatprep.subr.mxu0 0.0
        %1092 = vmatpush2.msra.mxu0 0.0
        %1093 = vmatprep.subr.mxu0 0.0
        %1094 = vmatpush2.msra.mxu0 0.0
        %1095 = vmatprep.subr.mxu0 0.0
        %1096 = vmatpush2.msra.mxu0 0.0
        %1097 = vmatprep.subr.mxu0 0.0
        %1098 = vmatpush2.msra.mxu0 0.0
        %1099 = vmatprep.subr.mxu0 0.0
        %1100 = vmatpush2.msra.mxu0 0.0
        %1101 = vmatprep.subr.mxu0 0.0
        %1102 = vmatpush2.msra.mxu0 0.0
        %1103 = vmatprep.subr.mxu0 0.0
        %1104 = vmatpush2.msra.mxu0 0.0
        %1105 = vmatprep.subr.mxu0 0.0
        %1106 = vmatpush2.msra.mxu0 0.0
        %1107 = vmatprep.subr.mxu0 0.0
        %1108 = vmatpush2.msra.mxu0 0.0
        %1109 = vmatprep.subr.mxu0 0.0
        %1110 = vmatpush2.msra.mxu0 0.0
        %1111 = vmatprep.subr.mxu0 0.0
        %1112 = vmatpush2.msra.mxu0 0.0
        %1113 = vmatprep.subr.mxu0 0.0
        %1114 = vmatpush2.msra.mxu0 0.0
        %1115 = vmatprep.mubr.f32.mxu0 0.0
        %1116 = vmatmul.mubr.f32.gmra.mxu0 %v1032
        %v1117 = vpop.f32.mrf.mxu0
        %v1118 = vadd.f32 0.0, %v1117
        %v1119 = vpop.f32.mrf.mxu0
        %1120 = vmatprep.mubr.f32.mxu0 0.0
        %1121 = vmatmul.mubr.f32.gmra.mxu0 %v1034
        %v1122 = vpop.f32.mrf.mxu0
        %v1123 = vadd.f32 0.0, %v1122
        %v1124 = vpop.f32.mrf.mxu0
        %1125 = vmatprep.mubr.f32.mxu0 0.0
        %1126 = vmatmul.mubr.f32.gmra.mxu0 %v1036
        %v1127 = vpop.f32.mrf.mxu0
        %v1128 = vadd.f32 0.0, %v1127
        %v1129 = vpop.f32.mrf.mxu0
        %1130 = vmatprep.mubr.f32.mxu0 0.0
        %1131 = vmatmul.mubr.f32.gmra.mxu0 %v1038
        %v1132 = vpop.f32.mrf.mxu0
        %v1133 = vadd.f32 0.0, %v1132
        %v1134 = vpop.f32.mrf.mxu0
        %1135 = vmatprep.mubr.f32.mxu0 0.0
        %1136 = vmatmul.mubr.f32.gmra.mxu0 %v1040
        %v1137 = vpop.f32.mrf.mxu0
        %v1138 = vadd.f32 0.0, %v1137
        %v1139 = vpop.f32.mrf.mxu0
        %1140 = vmatprep.mubr.f32.mxu0 0.0
        %1141 = vmatmul.mubr.f32.gmra.mxu0 %v1042
        %v1142 = vpop.f32.mrf.mxu0
        %v1143 = vadd.f32 0.0, %v1142
        %v1144 = vpop.f32.mrf.mxu0
        %1145 = vmatprep.mubr.f32.mxu0 0.0
        %1146 = vmatmul.mubr.f32.gmra.mxu0 %v1044
        %v1147 = vpop.f32.mrf.mxu0
        %v1148 = vadd.f32 0.0, %v1147
        %v1149 = vpop.f32.mrf.mxu0
        %1150 = vmatprep.mubr.f32.mxu0 0.0
        %1151 = vmatmul.mubr.f32.gmra.mxu0 %v1046
        %v1152 = vpop.f32.mrf.mxu0
        %v1153 = vadd.f32 0.0, %v1152
        %v1154 = vpop.f32.mrf.mxu0
        %1155 = vdwg.mxu0
        %v1156 = vadd.f32 %v977, %v1118
        %v1157 = vadd.f32 %v982, %v1123
        %v1158 = vadd.f32 %v987, %v1128
        %v1159 = vadd.f32 %v992, %v1133
        %v1160 = vadd.f32 %v997, %v1138
        %v1161 = vadd.f32 %v1002, %v1143
        %v1162 = vadd.f32 %v1007, %v1148
        %v1163 = vadd.f32 %v1012, %v1153
        %v1164 = vlaneseq
        %v1165 = vshrl.u32 %v1164, 7
        %v1166 = vsub.s32 0, %v1165
        %v1167 = vrot.slane %v738, %v1166
        %v1168 = vadd.f32 %v1156, %v1167
        %v1169 = vadd.f32 %v1157, %v1167
        %v1170 = vadd.f32 %v1158, %v1167
        %v1171 = vadd.f32 %v1159, %v1167
        %v1172 = vadd.f32 %v1160, %v1167
        %v1173 = vadd.f32 %v1161, %v1167
        %v1174 = vadd.f32 %v1162, %v1167
        %v1175 = vadd.f32 %v1163, %v1167
        %vm1176 = vcmask 64512
        %1177 = vst.msk [vmem:[#allocation2] sm:$0xff] %vm1176, %v1168
        %1178 = vst.msk [vmem:[#allocation2 + $0x8] sm:$0xff] %vm1176, %v1169
        %1179 = vst.msk [vmem:[#allocation2 + $0x10] sm:$0xff] %vm1176, %v1170
        %1180 = vst.msk [vmem:[#allocation2 + $0x18] sm:$0xff] %vm1176, %v1171
        %1181 = vst.msk [vmem:[#allocation2 + $0x20] sm:$0xff] %vm1176, %v1172
        %1182 = vst.msk [vmem:[#allocation2 + $0x28] sm:$0xff] %vm1176, %v1173
        %1183 = vst.msk [vmem:[#allocation2 + $0x30] sm:$0xff] %vm1176, %v1174
        %vm1184 = vcmask 62464
        %1185 = vst.msk [vmem:[#allocation2 + $0x38] sm:$0x3f] %vm1184, %v1175
        %v1186 = vld [vmem:[#allocation2] ss:$2 sm:$0xff]
        %s1187 = scalar_lea.vmem [#allocation2], 16
        %v1188 = vld [vmem:[%s1187] ss:$2 sm:$0xff]
        %s1189 = scalar_lea.vmem [#allocation2], 32
        %v1190 = vld [vmem:[%s1189] ss:$2 sm:$0xff]
        %s1191 = scalar_lea.vmem [#allocation2], 48
        %v1192 = vld [vmem:[%s1191] ss:$2 sm:$0x7f]
        %s1193 = scalar_lea.vmem [#allocation2], 1
        %v1194 = vld [vmem:[%s1193] ss:$2 sm:$0xff]
        %s1195 = scalar_lea.vmem [#allocation2], 17
        %v1196 = vld [vmem:[%s1195] ss:$2 sm:$0xff]
        %s1197 = scalar_lea.vmem [#allocation2], 33
        %v1198 = vld [vmem:[%s1197] ss:$2 sm:$0xff]
        %s1199 = scalar_lea.vmem [#allocation2], 49
        %v1200 = vld [vmem:[%s1199] ss:$2 sm:$0x7f]
        %v1201 = vmax.f32 %v1186, %v1194
        %v1202 = vmax.f32 %v1188, %v1196
        %v1203 = vmax.f32 %v1190, %v1198
        %v1204 = vmax.f32 %v1192, %v1200
        %v1205 = vmax.f32 %v1201, 0.0
        %v1206 = vmax.f32 %v1202, 0.0
        %v1207 = vmax.f32 %v1203, 0.0
        %v1208 = vmax.f32 %v1204, 0.0
        %v1209 = vld [vmem:[%s6 + $0x2] sm:$0x1]
        %v1210 = vld [vmem:[%s3] sm:$0xff]
        %s1211 = scalar_lea.vmem %s3, 8
        %v1212 = vld [vmem:[%s1211] sm:$0xff]
        %v1217 = vrot.slane %v1205, 1
        %v1218 = vrot.slane %v1206, 1
        %v1219 = vsel %vm298, %v1217, %v1218
        %v1220 = vrot.slane %v1207, 1
        %v1221 = vsel %vm298, %v1218, %v1220
        %v1222 = vrot.slane %v1208, 1
        %v1223 = vsel %vm298, %v1220, %v1222
        %v1224 = vsel %vm1176, %v1219, 0
        %v1226 = vsel %vm1176, %v1221, 0
        %v1228 = vsel %vm1176, %v1223, 0
        %v1230 = vsel %vm1176, %v1222, 0
        %1232 = vmatprep.subr.mxu0 0.0
        %1233 = vmatpush1.msra.mxu0 0.0
        %1234 = vmatprep.subr.mxu0 0.0
        %1235 = vmatpush1.msra.mxu0 0.0
        %1236 = vmatprep.subr.mxu0 0.0
        %1237 = vmatpush1.msra.mxu0 0.0
        %1238 = vmatprep.subr.mxu0 0.0
        %1239 = vmatpush1.msra.mxu0 0.0
        %1240 = vmatprep.subr.mxu0 0.0
        %1241 = vmatpush1.msra.mxu0 0.0
        %1242 = vmatprep.subr.mxu0 0.0
        %1243 = vmatpush1.msra.mxu0 0.0
        %1244 = vmatprep.subr.mxu0 0.0
        %1245 = vmatpush1.msra.mxu0 0.0
        %1246 = vmatprep.subr.mxu0 0.0
        %1247 = vmatpush1.msra.mxu0 0.0
        %1248 = vmatprep.subr.mxu0 0.0
        %1249 = vmatpush1.msra.mxu0 0.0
        %1250 = vmatprep.subr.mxu0 0.0
        %1251 = vmatpush1.msra.mxu0 0.0
        %1252 = vmatprep.subr.mxu0 0.0
        %1253 = vmatpush1.msra.mxu0 0.0
        %1254 = vmatprep.subr.mxu0 0.0
        %1255 = vmatpush1.msra.mxu0 0.0
        %1256 = vmatprep.subr.mxu0 0.0
        %1257 = vmatpush1.msra.mxu0 0.0
        %1258 = vmatprep.subr.mxu0 0.0
        %1259 = vmatpush1.msra.mxu0 0.0
        %1260 = vmatprep.subr.mxu0 0.0
        %1261 = vmatpush1.msra.mxu0 0.0
        %1262 = vmatprep.subr.mxu0 0.0
        %1263 = vmatpush1.msra.mxu0 %v1212
        %1264 = vmatprep.subr.mxu0 0.0
        %1265 = vmatpush2.msra.mxu0 0.0
        %1266 = vmatprep.subr.mxu0 0.0
        %1267 = vmatpush2.msra.mxu0 0.0
        %1268 = vmatprep.subr.mxu0 0.0
        %1269 = vmatpush2.msra.mxu0 0.0
        %1270 = vmatprep.subr.mxu0 0.0
        %1271 = vmatpush2.msra.mxu0 0.0
        %1272 = vmatprep.subr.mxu0 0.0
        %1273 = vmatpush2.msra.mxu0 0.0
        %1274 = vmatprep.subr.mxu0 0.0
        %1275 = vmatpush2.msra.mxu0 0.0
        %1276 = vmatprep.subr.mxu0 0.0
        %1277 = vmatpush2.msra.mxu0 0.0
        %1278 = vmatprep.subr.mxu0 0.0
        %1279 = vmatpush2.msra.mxu0 0.0
        %1280 = vmatprep.subr.mxu0 0.0
        %1281 = vmatpush2.msra.mxu0 0.0
        %1282 = vmatprep.subr.mxu0 0.0
        %1283 = vmatpush2.msra.mxu0 0.0
        %1284 = vmatprep.subr.mxu0 0.0
        %1285 = vmatpush2.msra.mxu0 0.0
        %1286 = vmatprep.subr.mxu0 0.0
        %1287 = vmatpush2.msra.mxu0 0.0
        %1288 = vmatprep.subr.mxu0 0.0
        %1289 = vmatpush2.msra.mxu0 0.0
        %1290 = vmatprep.subr.mxu0 0.0
        %1291 = vmatpush2.msra.mxu0 0.0
        %1292 = vmatprep.subr.mxu0 0.0
        %1293 = vmatpush2.msra.mxu0 0.0
        %1294 = vmatprep.subr.mxu0 0.0
        %1295 = vmatpush2.msra.mxu0 0.0
        %1296 = vmatprep.mubr.f32.mxu0 0.0
        %1297 = vmatmul.mubr.f32.gmra.mxu0 %v1224
        %v1298 = vpop.f32.mrf.mxu0
        %v1299 = vadd.f32 0.0, %v1298
        %v1300 = vpop.f32.mrf.mxu0
        %1301 = vmatprep.mubr.f32.mxu0 0.0
        %1302 = vmatmul.mubr.f32.gmra.mxu0 %v1226
        %v1303 = vpop.f32.mrf.mxu0
        %v1304 = vadd.f32 0.0, %v1303
        %v1305 = vpop.f32.mrf.mxu0
        %1306 = vmatprep.mubr.f32.mxu0 0.0
        %1307 = vmatmul.mubr.f32.gmra.mxu0 %v1228
        %v1308 = vpop.f32.mrf.mxu0
        %v1309 = vadd.f32 0.0, %v1308
        %v1310 = vpop.f32.mrf.mxu0
        %1311 = vmatprep.mubr.f32.mxu0 0.0
        %1312 = vmatmul.mubr.f32.gmra.mxu0 %v1230
        %v1313 = vpop.f32.mrf.mxu0
        %v1314 = vadd.f32 0.0, %v1313
        %v1315 = vpop.f32.mrf.mxu0
        %1316 = vdwg.mxu0
        %v1317 = vsel %vm1176, %v1205, 0
        %v1319 = vsel %vm1176, %v1206, 0
        %v1321 = vsel %vm1176, %v1207, 0
        %v1323 = vsel %vm1176, %v1208, 0
        %1325 = vmatprep.subr.mxu0 0.0
        %1326 = vmatpush1.msra.mxu0 0.0
        %1327 = vmatprep.subr.mxu0 0.0
        %1328 = vmatpush1.msra.mxu0 0.0
        %1329 = vmatprep.subr.mxu0 0.0
        %1330 = vmatpush1.msra.mxu0 0.0
        %1331 = vmatprep.subr.mxu0 0.0
        %1332 = vmatpush1.msra.mxu0 0.0
        %1333 = vmatprep.subr.mxu0 0.0
        %1334 = vmatpush1.msra.mxu0 0.0
        %1335 = vmatprep.subr.mxu0 0.0
        %1336 = vmatpush1.msra.mxu0 0.0
        %1337 = vmatprep.subr.mxu0 0.0
        %1338 = vmatpush1.msra.mxu0 0.0
        %1339 = vmatprep.subr.mxu0 0.0
        %1340 = vmatpush1.msra.mxu0 0.0
        %1341 = vmatprep.subr.mxu0 0.0
        %1342 = vmatpush1.msra.mxu0 0.0
        %1343 = vmatprep.subr.mxu0 0.0
        %1344 = vmatpush1.msra.mxu0 0.0
        %1345 = vmatprep.subr.mxu0 0.0
        %1346 = vmatpush1.msra.mxu0 0.0
        %1347 = vmatprep.subr.mxu0 0.0
        %1348 = vmatpush1.msra.mxu0 0.0
        %1349 = vmatprep.subr.mxu0 0.0
        %1350 = vmatpush1.msra.mxu0 0.0
        %1351 = vmatprep.subr.mxu0 0.0
        %1352 = vmatpush1.msra.mxu0 0.0
        %1353 = vmatprep.subr.mxu0 0.0
        %1354 = vmatpush1.msra.mxu0 0.0
        %1355 = vmatprep.subr.mxu0 0.0
        %1356 = vmatpush1.msra.mxu0 %v1210
        %1357 = vmatprep.subr.mxu0 0.0
        %1358 = vmatpush2.msra.mxu0 0.0
        %1359 = vmatprep.subr.mxu0 0.0
        %1360 = vmatpush2.msra.mxu0 0.0
        %1361 = vmatprep.subr.mxu0 0.0
        %1362 = vmatpush2.msra.mxu0 0.0
        %1363 = vmatprep.subr.mxu0 0.0
        %1364 = vmatpush2.msra.mxu0 0.0
        %1365 = vmatprep.subr.mxu0 0.0
        %1366 = vmatpush2.msra.mxu0 0.0
        %1367 = vmatprep.subr.mxu0 0.0
        %1368 = vmatpush2.msra.mxu0 0.0
        %1369 = vmatprep.subr.mxu0 0.0
        %1370 = vmatpush2.msra.mxu0 0.0
        %1371 = vmatprep.subr.mxu0 0.0
        %1372 = vmatpush2.msra.mxu0 0.0
        %1373 = vmatprep.subr.mxu0 0.0
        %1374 = vmatpush2.msra.mxu0 0.0
        %1375 = vmatprep.subr.mxu0 0.0
        %1376 = vmatpush2.msra.mxu0 0.0
        %1377 = vmatprep.subr.mxu0 0.0
        %1378 = vmatpush2.msra.mxu0 0.0
        %1379 = vmatprep.subr.mxu0 0.0
        %1380 = vmatpush2.msra.mxu0 0.0
        %1381 = vmatprep.subr.mxu0 0.0
        %1382 = vmatpush2.msra.mxu0 0.0
        %1383 = vmatprep.subr.mxu0 0.0
        %1384 = vmatpush2.msra.mxu0 0.0
        %1385 = vmatprep.subr.mxu0 0.0
        %1386 = vmatpush2.msra.mxu0 0.0
        %1387 = vmatprep.subr.mxu0 0.0
        %1388 = vmatpush2.msra.mxu0 0.0
        %1389 = vmatprep.mubr.f32.mxu0 0.0
        %1390 = vmatmul.mubr.f32.gmra.mxu0 %v1317
        %v1391 = vpop.f32.mrf.mxu0
        %v1392 = vadd.f32 %v1299, %v1391
        %v1393 = vpop.f32.mrf.mxu0
        %1394 = vmatprep.mubr.f32.mxu0 0.0
        %1395 = vmatmul.mubr.f32.gmra.mxu0 %v1319
        %v1396 = vpop.f32.mrf.mxu0
        %v1397 = vadd.f32 %v1304, %v1396
        %v1398 = vpop.f32.mrf.mxu0
        %1399 = vmatprep.mubr.f32.mxu0 0.0
        %1400 = vmatmul.mubr.f32.gmra.mxu0 %v1321
        %v1401 = vpop.f32.mrf.mxu0
        %v1402 = vadd.f32 %v1309, %v1401
        %v1403 = vpop.f32.mrf.mxu0
        %1404 = vmatprep.mubr.f32.mxu0 0.0
        %1405 = vmatmul.mubr.f32.gmra.mxu0 %v1323
        %v1406 = vpop.f32.mrf.mxu0
        %v1407 = vadd.f32 %v1314, %v1406
        %v1408 = vpop.f32.mrf.mxu0
        %1409 = vdwg.mxu0
        %s1410 = scalar_lea.vmem %s3, 16
        %v1411 = vld [vmem:[%s1410] sm:$0xff]
        %v1412 = vrot.slane %v1205, 2
        %v1413 = vrot.slane %v1206, 2
        %v1414 = vsel %vm568, %v1412, %v1413
        %v1415 = vrot.slane %v1207, 2
        %v1416 = vsel %vm568, %v1413, %v1415
        %v1417 = vrot.slane %v1208, 2
        %v1418 = vsel %vm568, %v1415, %v1417
        %v1419 = vsel %vm1176, %v1414, 0
        %v1421 = vsel %vm1176, %v1416, 0
        %v1423 = vsel %vm1176, %v1418, 0
        %v1425 = vsel %vm1176, %v1417, 0
        %1427 = vmatprep.subr.mxu0 0.0
        %1428 = vmatpush1.msra.mxu0 0.0
        %1429 = vmatprep.subr.mxu0 0.0
        %1430 = vmatpush1.msra.mxu0 0.0
        %1431 = vmatprep.subr.mxu0 0.0
        %1432 = vmatpush1.msra.mxu0 0.0
        %1433 = vmatprep.subr.mxu0 0.0
        %1434 = vmatpush1.msra.mxu0 0.0
        %1435 = vmatprep.subr.mxu0 0.0
        %1436 = vmatpush1.msra.mxu0 0.0
        %1437 = vmatprep.subr.mxu0 0.0
        %1438 = vmatpush1.msra.mxu0 0.0
        %1439 = vmatprep.subr.mxu0 0.0
        %1440 = vmatpush1.msra.mxu0 0.0
        %1441 = vmatprep.subr.mxu0 0.0
        %1442 = vmatpush1.msra.mxu0 0.0
        %1443 = vmatprep.subr.mxu0 0.0
        %1444 = vmatpush1.msra.mxu0 0.0
        %1445 = vmatprep.subr.mxu0 0.0
        %1446 = vmatpush1.msra.mxu0 0.0
        %1447 = vmatprep.subr.mxu0 0.0
        %1448 = vmatpush1.msra.mxu0 0.0
        %1449 = vmatprep.subr.mxu0 0.0
        %1450 = vmatpush1.msra.mxu0 0.0
        %1451 = vmatprep.subr.mxu0 0.0
        %1452 = vmatpush1.msra.mxu0 0.0
        %1453 = vmatprep.subr.mxu0 0.0
        %1454 = vmatpush1.msra.mxu0 0.0
        %1455 = vmatprep.subr.mxu0 0.0
        %1456 = vmatpush1.msra.mxu0 0.0
        %1457 = vmatprep.subr.mxu0 0.0
        %1458 = vmatpush1.msra.mxu0 %v1411
        %1459 = vmatprep.subr.mxu0 0.0
        %1460 = vmatpush2.msra.mxu0 0.0
        %1461 = vmatprep.subr.mxu0 0.0
        %1462 = vmatpush2.msra.mxu0 0.0
        %1463 = vmatprep.subr.mxu0 0.0
        %1464 = vmatpush2.msra.mxu0 0.0
        %1465 = vmatprep.subr.mxu0 0.0
        %1466 = vmatpush2.msra.mxu0 0.0
        %1467 = vmatprep.subr.mxu0 0.0
        %1468 = vmatpush2.msra.mxu0 0.0
        %1469 = vmatprep.subr.mxu0 0.0
        %1470 = vmatpush2.msra.mxu0 0.0
        %1471 = vmatprep.subr.mxu0 0.0
        %1472 = vmatpush2.msra.mxu0 0.0
        %1473 = vmatprep.subr.mxu0 0.0
        %1474 = vmatpush2.msra.mxu0 0.0
        %1475 = vmatprep.subr.mxu0 0.0
        %1476 = vmatpush2.msra.mxu0 0.0
        %1477 = vmatprep.subr.mxu0 0.0
        %1478 = vmatpush2.msra.mxu0 0.0
        %1479 = vmatprep.subr.mxu0 0.0
        %1480 = vmatpush2.msra.mxu0 0.0
        %1481 = vmatprep.subr.mxu0 0.0
        %1482 = vmatpush2.msra.mxu0 0.0
        %1483 = vmatprep.subr.mxu0 0.0
        %1484 = vmatpush2.msra.mxu0 0.0
        %1485 = vmatprep.subr.mxu0 0.0
        %1486 = vmatpush2.msra.mxu0 0.0
        %1487 = vmatprep.subr.mxu0 0.0
        %1488 = vmatpush2.msra.mxu0 0.0
        %1489 = vmatprep.subr.mxu0 0.0
        %1490 = vmatpush2.msra.mxu0 0.0
        %1491 = vmatprep.mubr.f32.mxu0 0.0
        %1492 = vmatmul.mubr.f32.gmra.mxu0 %v1419
        %v1493 = vpop.f32.mrf.mxu0
        %v1494 = vadd.f32 0.0, %v1493
        %v1495 = vpop.f32.mrf.mxu0
        %1496 = vmatprep.mubr.f32.mxu0 0.0
        %1497 = vmatmul.mubr.f32.gmra.mxu0 %v1421
        %v1498 = vpop.f32.mrf.mxu0
        %v1499 = vadd.f32 0.0, %v1498
        %v1500 = vpop.f32.mrf.mxu0
        %1501 = vmatprep.mubr.f32.mxu0 0.0
        %1502 = vmatmul.mubr.f32.gmra.mxu0 %v1423
        %v1503 = vpop.f32.mrf.mxu0
        %v1504 = vadd.f32 0.0, %v1503
        %v1505 = vpop.f32.mrf.mxu0
        %1506 = vmatprep.mubr.f32.mxu0 0.0
        %1507 = vmatmul.mubr.f32.gmra.mxu0 %v1425
        %v1508 = vpop.f32.mrf.mxu0
        %v1509 = vadd.f32 0.0, %v1508
        %v1510 = vpop.f32.mrf.mxu0
        %1511 = vdwg.mxu0
        %v1512 = vadd.f32 %v1392, %v1494
        %v1513 = vadd.f32 %v1397, %v1499
        %v1514 = vadd.f32 %v1402, %v1504
        %v1515 = vadd.f32 %v1407, %v1509
        %v1516 = vlaneseq
        %v1517 = vshrl.u32 %v1516, 7
        %v1518 = vsub.s32 0, %v1517
        %v1519 = vrot.slane %v1209, %v1518
        %v1520 = vadd.f32 %v1512, %v1519
        %v1521 = vadd.f32 %v1513, %v1519
        %v1522 = vadd.f32 %v1514, %v1519
        %v1523 = vadd.f32 %v1515, %v1519
        %1524 = vst.msk [vmem:[#allocation2] sm:$0xff] %vm1176, %v1520
        %1525 = vst.msk [vmem:[#allocation2 + $0x8] sm:$0xff] %vm1176, %v1521
        %1526 = vst.msk [vmem:[#allocation2 + $0x10] sm:$0xff] %vm1176, %v1522
        %vm1527 = vcmask 61440
        %1528 = vst.msk [vmem:[#allocation2 + $0x18] sm:$0x1f] %vm1527, %v1523
        %v1529 = vld [vmem:[#allocation2] ss:$2 sm:$0xff]
        %v1530 = vld [vmem:[%s1187] ss:$2 sm:$0x3f]
        %v1531 = vld [vmem:[%s1193] ss:$2 sm:$0xff]
        %v1532 = vld [vmem:[%s1195] ss:$2 sm:$0x3f]
        %v1533 = vmax.f32 %v1529, %v1531
        %v1534 = vmax.f32 %v1530, %v1532
        %v1535 = vmax.f32 %v1533, 0.0
        %v1536 = vmax.f32 %v1534, 0.0
        %v1537 = vld [vmem:[%s6 + $0x3] sm:$0x1]
        %v1538 = vld [vmem:[%s4] sm:$0xff]
        %s1539 = scalar_lea.vmem %s4, 8
        %v1540 = vld [vmem:[%s1539] sm:$0xff]
        %v1543 = vrot.slane %v1535, 1
        %v1544 = vrot.slane %v1536, 1
        %v1545 = vsel %vm298, %v1543, %v1544
        %v1546 = vsel %vm1176, %v1545, 0
        %v1548 = vsel %vm1176, %v1544, 0
        %1550 = vmatprep.subr.mxu0 0.0
        %1551 = vmatpush1.msra.mxu0 0.0
        %1552 = vmatprep.subr.mxu0 0.0
        %1553 = vmatpush1.msra.mxu0 0.0
        %1554 = vmatprep.subr.mxu0 0.0
        %1555 = vmatpush1.msra.mxu0 0.0
        %1556 = vmatprep.subr.mxu0 0.0
        %1557 = vmatpush1.msra.mxu0 0.0
        %1558 = vmatprep.subr.mxu0 0.0
        %1559 = vmatpush1.msra.mxu0 0.0
        %1560 = vmatprep.subr.mxu0 0.0
        %1561 = vmatpush1.msra.mxu0 0.0
        %1562 = vmatprep.subr.mxu0 0.0
        %1563 = vmatpush1.msra.mxu0 0.0
        %1564 = vmatprep.subr.mxu0 0.0
        %1565 = vmatpush1.msra.mxu0 0.0
        %1566 = vmatprep.subr.mxu0 0.0
        %1567 = vmatpush1.msra.mxu0 0.0
        %1568 = vmatprep.subr.mxu0 0.0
        %1569 = vmatpush1.msra.mxu0 0.0
        %1570 = vmatprep.subr.mxu0 0.0
        %1571 = vmatpush1.msra.mxu0 0.0
        %1572 = vmatprep.subr.mxu0 0.0
        %1573 = vmatpush1.msra.mxu0 0.0
        %1574 = vmatprep.subr.mxu0 0.0
        %1575 = vmatpush1.msra.mxu0 0.0
        %1576 = vmatprep.subr.mxu0 0.0
        %1577 = vmatpush1.msra.mxu0 0.0
        %1578 = vmatprep.subr.mxu0 0.0
        %1579 = vmatpush1.msra.mxu0 0.0
        %1580 = vmatprep.subr.mxu0 0.0
        %1581 = vmatpush1.msra.mxu0 %v1540
        %1582 = vmatprep.subr.mxu0 0.0
        %1583 = vmatpush2.msra.mxu0 0.0
        %1584 = vmatprep.subr.mxu0 0.0
        %1585 = vmatpush2.msra.mxu0 0.0
        %1586 = vmatprep.subr.mxu0 0.0
        %1587 = vmatpush2.msra.mxu0 0.0
        %1588 = vmatprep.subr.mxu0 0.0
        %1589 = vmatpush2.msra.mxu0 0.0
        %1590 = vmatprep.subr.mxu0 0.0
        %1591 = vmatpush2.msra.mxu0 0.0
        %1592 = vmatprep.subr.mxu0 0.0
        %1593 = vmatpush2.msra.mxu0 0.0
        %1594 = vmatprep.subr.mxu0 0.0
        %1595 = vmatpush2.msra.mxu0 0.0
        %1596 = vmatprep.subr.mxu0 0.0
        %1597 = vmatpush2.msra.mxu0 0.0
        %1598 = vmatprep.subr.mxu0 0.0
        %1599 = vmatpush2.msra.mxu0 0.0
        %1600 = vmatprep.subr.mxu0 0.0
        %1601 = vmatpush2.msra.mxu0 0.0
        %1602 = vmatprep.subr.mxu0 0.0
        %1603 = vmatpush2.msra.mxu0 0.0
        %1604 = vmatprep.subr.mxu0 0.0
        %1605 = vmatpush2.msra.mxu0 0.0
        %1606 = vmatprep.subr.mxu0 0.0
        %1607 = vmatpush2.msra.mxu0 0.0
        %1608 = vmatprep.subr.mxu0 0.0
        %1609 = vmatpush2.msra.mxu0 0.0
        %1610 = vmatprep.subr.mxu0 0.0
        %1611 = vmatpush2.msra.mxu0 0.0
        %1612 = vmatprep.subr.mxu0 0.0
        %1613 = vmatpush2.msra.mxu0 0.0
        %1614 = vmatprep.mubr.f32.mxu0 0.0
        %1615 = vmatmul.mubr.f32.gmra.mxu0 %v1546
        %v1616 = vpop.f32.mrf.mxu0
        %v1617 = vadd.f32 0.0, %v1616
        %v1618 = vpop.f32.mrf.mxu0
        %1619 = vmatprep.mubr.f32.mxu0 0.0
        %1620 = vmatmul.mubr.f32.gmra.mxu0 %v1548
        %v1621 = vpop.f32.mrf.mxu0
        %v1622 = vadd.f32 0.0, %v1621
        %v1623 = vpop.f32.mrf.mxu0
        %1624 = vdwg.mxu0
        %v1625 = vsel %vm1176, %v1535, 0
        %v1627 = vsel %vm1176, %v1536, 0
        %1629 = vmatprep.subr.mxu0 0.0
        %1630 = vmatpush1.msra.mxu0 0.0
        %1631 = vmatprep.subr.mxu0 0.0
        %1632 = vmatpush1.msra.mxu0 0.0
        %1633 = vmatprep.subr.mxu0 0.0
        %1634 = vmatpush1.msra.mxu0 0.0
        %1635 = vmatprep.subr.mxu0 0.0
        %1636 = vmatpush1.msra.mxu0 0.0
        %1637 = vmatprep.subr.mxu0 0.0
        %1638 = vmatpush1.msra.mxu0 0.0
        %1639 = vmatprep.subr.mxu0 0.0
        %1640 = vmatpush1.msra.mxu0 0.0
        %1641 = vmatprep.subr.mxu0 0.0
        %1642 = vmatpush1.msra.mxu0 0.0
        %1643 = vmatprep.subr.mxu0 0.0
        %1644 = vmatpush1.msra.mxu0 0.0
        %1645 = vmatprep.subr.mxu0 0.0
        %1646 = vmatpush1.msra.mxu0 0.0
        %1647 = vmatprep.subr.mxu0 0.0
        %1648 = vmatpush1.msra.mxu0 0.0
        %1649 = vmatprep.subr.mxu0 0.0
        %1650 = vmatpush1.msra.mxu0 0.0
        %1651 = vmatprep.subr.mxu0 0.0
        %1652 = vmatpush1.msra.mxu0 0.0
        %1653 = vmatprep.subr.mxu0 0.0
        %1654 = vmatpush1.msra.mxu0 0.0
        %1655 = vmatprep.subr.mxu0 0.0
        %1656 = vmatpush1.msra.mxu0 0.0
        %1657 = vmatprep.subr.mxu0 0.0
        %1658 = vmatpush1.msra.mxu0 0.0
        %1659 = vmatprep.subr.mxu0 0.0
        %1660 = vmatpush1.msra.mxu0 %v1538
        %1661 = vmatprep.subr.mxu0 0.0
        %1662 = vmatpush2.msra.mxu0 0.0
        %1663 = vmatprep.subr.mxu0 0.0
        %1664 = vmatpush2.msra.mxu0 0.0
        %1665 = vmatprep.subr.mxu0 0.0
        %1666 = vmatpush2.msra.mxu0 0.0
        %1667 = vmatprep.subr.mxu0 0.0
        %1668 = vmatpush2.msra.mxu0 0.0
        %1669 = vmatprep.subr.mxu0 0.0
        %1670 = vmatpush2.msra.mxu0 0.0
        %1671 = vmatprep.subr.mxu0 0.0
        %1672 = vmatpush2.msra.mxu0 0.0
        %1673 = vmatprep.subr.mxu0 0.0
        %1674 = vmatpush2.msra.mxu0 0.0
        %1675 = vmatprep.subr.mxu0 0.0
        %1676 = vmatpush2.msra.mxu0 0.0
        %1677 = vmatprep.subr.mxu0 0.0
        %1678 = vmatpush2.msra.mxu0 0.0
        %1679 = vmatprep.subr.mxu0 0.0
        %1680 = vmatpush2.msra.mxu0 0.0
        %1681 = vmatprep.subr.mxu0 0.0
        %1682 = vmatpush2.msra.mxu0 0.0
        %1683 = vmatprep.subr.mxu0 0.0
        %1684 = vmatpush2.msra.mxu0 0.0
        %1685 = vmatprep.subr.mxu0 0.0
        %1686 = vmatpush2.msra.mxu0 0.0
        %1687 = vmatprep.subr.mxu0 0.0
        %1688 = vmatpush2.msra.mxu0 0.0
        %1689 = vmatprep.subr.mxu0 0.0
        %1690 = vmatpush2.msra.mxu0 0.0
        %1691 = vmatprep.subr.mxu0 0.0
        %1692 = vmatpush2.msra.mxu0 0.0
        %1693 = vmatprep.mubr.f32.mxu0 0.0
        %1694 = vmatmul.mubr.f32.gmra.mxu0 %v1625
        %v1695 = vpop.f32.mrf.mxu0
        %v1696 = vadd.f32 %v1617, %v1695
        %v1697 = vpop.f32.mrf.mxu0
        %1698 = vmatprep.mubr.f32.mxu0 0.0
        %1699 = vmatmul.mubr.f32.gmra.mxu0 %v1627
        %v1700 = vpop.f32.mrf.mxu0
        %v1701 = vadd.f32 %v1622, %v1700
        %v1702 = vpop.f32.mrf.mxu0
        %1703 = vdwg.mxu0
        %s1704 = scalar_lea.vmem %s4, 16
        %v1705 = vld [vmem:[%s1704] sm:$0xff]
        %v1706 = vrot.slane %v1535, 2
        %v1707 = vrot.slane %v1536, 2
        %v1708 = vsel %vm568, %v1706, %v1707
        %v1709 = vsel %vm1176, %v1708, 0
        %v1711 = vsel %vm1176, %v1707, 0
        %1713 = vmatprep.subr.mxu0 0.0
        %1714 = vmatpush1.msra.mxu0 0.0
        %1715 = vmatprep.subr.mxu0 0.0
        %1716 = vmatpush1.msra.mxu0 0.0
        %1717 = vmatprep.subr.mxu0 0.0
        %1718 = vmatpush1.msra.mxu0 0.0
        %1719 = vmatprep.subr.mxu0 0.0
        %1720 = vmatpush1.msra.mxu0 0.0
        %1721 = vmatprep.subr.mxu0 0.0
        %1722 = vmatpush1.msra.mxu0 0.0
        %1723 = vmatprep.subr.mxu0 0.0
        %1724 = vmatpush1.msra.mxu0 0.0
        %1725 = vmatprep.subr.mxu0 0.0
        %1726 = vmatpush1.msra.mxu0 0.0
        %1727 = vmatprep.subr.mxu0 0.0
        %1728 = vmatpush1.msra.mxu0 0.0
        %1729 = vmatprep.subr.mxu0 0.0
        %1730 = vmatpush1.msra.mxu0 0.0
        %1731 = vmatprep.subr.mxu0 0.0
        %1732 = vmatpush1.msra.mxu0 0.0
        %1733 = vmatprep.subr.mxu0 0.0
        %1734 = vmatpush1.msra.mxu0 0.0
        %1735 = vmatprep.subr.mxu0 0.0
        %1736 = vmatpush1.msra.mxu0 0.0
        %1737 = vmatprep.subr.mxu0 0.0
        %1738 = vmatpush1.msra.mxu0 0.0
        %1739 = vmatprep.subr.mxu0 0.0
        %1740 = vmatpush1.msra.mxu0 0.0
        %1741 = vmatprep.subr.mxu0 0.0
        %1742 = vmatpush1.msra.mxu0 0.0
        %1743 = vmatprep.subr.mxu0 0.0
        %1744 = vmatpush1.msra.mxu0 %v1705
        %1745 = vmatprep.subr.mxu0 0.0
        %1746 = vmatpush2.msra.mxu0 0.0
        %1747 = vmatprep.subr.mxu0 0.0
        %1748 = vmatpush2.msra.mxu0 0.0
        %1749 = vmatprep.subr.mxu0 0.0
        %1750 = vmatpush2.msra.mxu0 0.0
        %1751 = vmatprep.subr.mxu0 0.0
        %1752 = vmatpush2.msra.mxu0 0.0
        %1753 = vmatprep.subr.mxu0 0.0
        %1754 = vmatpush2.msra.mxu0 0.0
        %1755 = vmatprep.subr.mxu0 0.0
        %1756 = vmatpush2.msra.mxu0 0.0
        %1757 = vmatprep.subr.mxu0 0.0
        %1758 = vmatpush2.msra.mxu0 0.0
        %1759 = vmatprep.subr.mxu0 0.0
        %1760 = vmatpush2.msra.mxu0 0.0
        %1761 = vmatprep.subr.mxu0 0.0
        %1762 = vmatpush2.msra.mxu0 0.0
        %1763 = vmatprep.subr.mxu0 0.0
        %1764 = vmatpush2.msra.mxu0 0.0
        %1765 = vmatprep.subr.mxu0 0.0
        %1766 = vmatpush2.msra.mxu0 0.0
        %1767 = vmatprep.subr.mxu0 0.0
        %1768 = vmatpush2.msra.mxu0 0.0
        %1769 = vmatprep.subr.mxu0 0.0
        %1770 = vmatpush2.msra.mxu0 0.0
        %1771 = vmatprep.subr.mxu0 0.0
        %1772 = vmatpush2.msra.mxu0 0.0
        %1773 = vmatprep.subr.mxu0 0.0
        %1774 = vmatpush2.msra.mxu0 0.0
        %1775 = vmatprep.subr.mxu0 0.0
        %1776 = vmatpush2.msra.mxu0 0.0
        %1777 = vmatprep.mubr.f32.mxu0 0.0
        %1778 = vmatmul.mubr.f32.gmra.mxu0 %v1709
        %v1779 = vpop.f32.mrf.mxu0
        %v1780 = vadd.f32 0.0, %v1779
        %v1781 = vpop.f32.mrf.mxu0
        %1782 = vmatprep.mubr.f32.mxu0 0.0
        %1783 = vmatmul.mubr.f32.gmra.mxu0 %v1711
        %v1784 = vpop.f32.mrf.mxu0
        %v1785 = vadd.f32 0.0, %v1784
        %v1786 = vpop.f32.mrf.mxu0
        %1787 = vdwg.mxu0
        %v1788 = vadd.f32 %v1696, %v1780
        %v1789 = vadd.f32 %v1701, %v1785
        %v1790 = vlaneseq
        %v1791 = vshrl.u32 %v1790, 7
        %v1792 = vsub.s32 0, %v1791
        %v1793 = vrot.slane %v1537, %v1792
        %v1794 = vadd.f32 %v1788, %v1793
        %v1795 = vadd.f32 %v1789, %v1793
        %vm1796 = vcmask 130048
        %1797 = vst.msk [vmem:[#allocation2] sm:$0xff] %vm1796, %v1794
        %vm1798 = vcmask 125952
        %1799 = vst.msk [vmem:[#allocation2 + $0x8] sm:$0xf] %vm1798, %v1795
        %v1800 = vld [vmem:[#allocation2] ss:$2 sm:$0x3f]
        %v1801 = vld [vmem:[%s1193] ss:$2 sm:$0x3f]
        %v1802 = vmax.f32 %v1800, %v1801
        %v1803 = vmax.f32 %v1802, 0.0
        %v1804 = vld [vmem:[%s6 + $0x4] sm:$0x1]
        %v1805 = vld [vmem:[%s5] sm:$0xff]
        %v1806 = vld [vmem:[%s5 + $0x8] sm:$0xff]
        %v1808 = vsel %vm1796, %v1803, 0
        %1810 = vmatprep.subr.mxu0 0.0
        %1811 = vmatpush1.msra.mxu0 0.0
        %1812 = vmatprep.subr.mxu0 0.0
        %1813 = vmatpush1.msra.mxu0 0.0
        %1814 = vmatprep.subr.mxu0 0.0
        %1815 = vmatpush1.msra.mxu0 0.0
        %1816 = vmatprep.subr.mxu0 0.0
        %1817 = vmatpush1.msra.mxu0 0.0
        %1818 = vmatprep.subr.mxu0 0.0
        %1819 = vmatpush1.msra.mxu0 0.0
        %1820 = vmatprep.subr.mxu0 0.0
        %1821 = vmatpush1.msra.mxu0 0.0
        %1822 = vmatprep.subr.mxu0 0.0
        %1823 = vmatpush1.msra.mxu0 0.0
        %1824 = vmatprep.subr.mxu0 0.0
        %1825 = vmatpush1.msra.mxu0 0.0
        %1826 = vmatprep.subr.mxu0 0.0
        %1827 = vmatpush1.msra.mxu0 0.0
        %1828 = vmatprep.subr.mxu0 0.0
        %1829 = vmatpush1.msra.mxu0 0.0
        %1830 = vmatprep.subr.mxu0 0.0
        %1831 = vmatpush1.msra.mxu0 0.0
        %1832 = vmatprep.subr.mxu0 0.0
        %1833 = vmatpush1.msra.mxu0 0.0
        %1834 = vmatprep.subr.mxu0 0.0
        %1835 = vmatpush1.msra.mxu0 0.0
        %1836 = vmatprep.subr.mxu0 0.0
        %1837 = vmatpush1.msra.mxu0 0.0
        %1838 = vmatprep.subr.mxu0 0.0
        %1839 = vmatpush1.msra.mxu0 %v1806
        %1840 = vmatprep.subr.mxu0 0.0
        %1841 = vmatpush1.msra.mxu0 %v1805
        %1842 = vmatprep.subr.mxu0 0.0
        %1843 = vmatpush2.msra.mxu0 0.0
        %1844 = vmatprep.subr.mxu0 0.0
        %1845 = vmatpush2.msra.mxu0 0.0
        %1846 = vmatprep.subr.mxu0 0.0
        %1847 = vmatpush2.msra.mxu0 0.0
        %1848 = vmatprep.subr.mxu0 0.0
        %1849 = vmatpush2.msra.mxu0 0.0
        %1850 = vmatprep.subr.mxu0 0.0
        %1851 = vmatpush2.msra.mxu0 0.0
        %1852 = vmatprep.subr.mxu0 0.0
        %1853 = vmatpush2.msra.mxu0 0.0
        %1854 = vmatprep.subr.mxu0 0.0
        %1855 = vmatpush2.msra.mxu0 0.0
        %1856 = vmatprep.subr.mxu0 0.0
        %1857 = vmatpush2.msra.mxu0 0.0
        %1858 = vmatprep.subr.mxu0 0.0
        %1859 = vmatpush2.msra.mxu0 0.0
        %1860 = vmatprep.subr.mxu0 0.0
        %1861 = vmatpush2.msra.mxu0 0.0
        %1862 = vmatprep.subr.mxu0 0.0
        %1863 = vmatpush2.msra.mxu0 0.0
        %1864 = vmatprep.subr.mxu0 0.0
        %1865 = vmatpush2.msra.mxu0 0.0
        %1866 = vmatprep.subr.mxu0 0.0
        %1867 = vmatpush2.msra.mxu0 0.0
        %1868 = vmatprep.subr.mxu0 0.0
        %1869 = vmatpush2.msra.mxu0 0.0
        %1870 = vmatprep.subr.mxu0 0.0
        %1871 = vmatpush2.msra.mxu0 0.0
        %1872 = vmatprep.subr.mxu0 0.0
        %1873 = vmatpush2.msra.mxu0 0.0
        %1874 = vmatprep.mubr.f32.mxu0 0.0
        %1875 = vmatmul.mubr.f32.gmra.mxu0 %v1808
        %v1876 = vpop.f32.mrf.mxu0
        %v1877 = vadd.f32 0.0, %v1876
        %v1878 = vpop.f32.mrf.mxu0
        %1879 = vdwg.mxu0
        %v1880 = vadd.f32 %v1804, %v1877
        %s1881 = scalar_lea.vmem %s5, 16
        %v1882 = vld [vmem:[%s1881] sm:$0xff]
        %v1883 = vld [vmem:[%s1881 + $0x8] sm:$0xff]
        %v1884 = vrot.slane %v1803, 1
        %v1885 = vsel %vm1796, %v1884, 0
        %1887 = vmatprep.subr.mxu0 0.0
        %1888 = vmatpush1.msra.mxu0 0.0
        %1889 = vmatprep.subr.mxu0 0.0
        %1890 = vmatpush1.msra.mxu0 0.0
        %1891 = vmatprep.subr.mxu0 0.0
        %1892 = vmatpush1.msra.mxu0 0.0
        %1893 = vmatprep.subr.mxu0 0.0
        %1894 = vmatpush1.msra.mxu0 0.0
        %1895 = vmatprep.subr.mxu0 0.0
        %1896 = vmatpush1.msra.mxu0 0.0
        %1897 = vmatprep.subr.mxu0 0.0
        %1898 = vmatpush1.msra.mxu0 0.0
        %1899 = vmatprep.subr.mxu0 0.0
        %1900 = vmatpush1.msra.mxu0 0.0
        %1901 = vmatprep.subr.mxu0 0.0
        %1902 = vmatpush1.msra.mxu0 0.0
        %1903 = vmatprep.subr.mxu0 0.0
        %1904 = vmatpush1.msra.mxu0 0.0
        %1905 = vmatprep.subr.mxu0 0.0
        %1906 = vmatpush1.msra.mxu0 0.0
        %1907 = vmatprep.subr.mxu0 0.0
        %1908 = vmatpush1.msra.mxu0 0.0
        %1909 = vmatprep.subr.mxu0 0.0
        %1910 = vmatpush1.msra.mxu0 0.0
        %1911 = vmatprep.subr.mxu0 0.0
        %1912 = vmatpush1.msra.mxu0 0.0
        %1913 = vmatprep.subr.mxu0 0.0
        %1914 = vmatpush1.msra.mxu0 0.0
        %1915 = vmatprep.subr.mxu0 0.0
        %1916 = vmatpush1.msra.mxu0 %v1883
        %1917 = vmatprep.subr.mxu0 0.0
        %1918 = vmatpush1.msra.mxu0 %v1882
        %1919 = vmatprep.subr.mxu0 0.0
        %1920 = vmatpush2.msra.mxu0 0.0
        %1921 = vmatprep.subr.mxu0 0.0
        %1922 = vmatpush2.msra.mxu0 0.0
        %1923 = vmatprep.subr.mxu0 0.0
        %1924 = vmatpush2.msra.mxu0 0.0
        %1925 = vmatprep.subr.mxu0 0.0
        %1926 = vmatpush2.msra.mxu0 0.0
        %1927 = vmatprep.subr.mxu0 0.0
        %1928 = vmatpush2.msra.mxu0 0.0
        %1929 = vmatprep.subr.mxu0 0.0
        %1930 = vmatpush2.msra.mxu0 0.0
        %1931 = vmatprep.subr.mxu0 0.0
        %1932 = vmatpush2.msra.mxu0 0.0
        %1933 = vmatprep.subr.mxu0 0.0
        %1934 = vmatpush2.msra.mxu0 0.0
        %1935 = vmatprep.subr.mxu0 0.0
        %1936 = vmatpush2.msra.mxu0 0.0
        %1937 = vmatprep.subr.mxu0 0.0
        %1938 = vmatpush2.msra.mxu0 0.0
        %1939 = vmatprep.subr.mxu0 0.0
        %1940 = vmatpush2.msra.mxu0 0.0
        %1941 = vmatprep.subr.mxu0 0.0
        %1942 = vmatpush2.msra.mxu0 0.0
        %1943 = vmatprep.subr.mxu0 0.0
        %1944 = vmatpush2.msra.mxu0 0.0
        %1945 = vmatprep.subr.mxu0 0.0
        %1946 = vmatpush2.msra.mxu0 0.0
        %1947 = vmatprep.subr.mxu0 0.0
        %1948 = vmatpush2.msra.mxu0 0.0
        %1949 = vmatprep.subr.mxu0 0.0
        %1950 = vmatpush2.msra.mxu0 0.0
        %1951 = vmatprep.mubr.f32.mxu0 0.0
        %1952 = vmatmul.mubr.f32.gmra.mxu0 %v1885
        %v1953 = vpop.f32.mrf.mxu0
        %v1954 = vadd.f32 0.0, %v1953
        %v1955 = vpop.f32.mrf.mxu0
        %1956 = vdwg.mxu0
        %v1957 = vadd.f32 %v1880, %v1954
        %s1958 = scalar_lea.vmem %s5, 32
        %v1959 = vld [vmem:[%s1958] sm:$0xff]
        %v1960 = vld [vmem:[%s1958 + $0x8] sm:$0xff]
        %v1961 = vrot.slane %v1803, 2
        %v1962 = vsel %vm1796, %v1961, 0
        %1964 = vmatprep.subr.mxu0 0.0
        %1965 = vmatpush1.msra.mxu0 0.0
        %1966 = vmatprep.subr.mxu0 0.0
        %1967 = vmatpush1.msra.mxu0 0.0
        %1968 = vmatprep.subr.mxu0 0.0
        %1969 = vmatpush1.msra.mxu0 0.0
        %1970 = vmatprep.subr.mxu0 0.0
        %1971 = vmatpush1.msra.mxu0 0.0
        %1972 = vmatprep.subr.mxu0 0.0
        %1973 = vmatpush1.msra.mxu0 0.0
        %1974 = vmatprep.subr.mxu0 0.0
        %1975 = vmatpush1.msra.mxu0 0.0
        %1976 = vmatprep.subr.mxu0 0.0
        %1977 = vmatpush1.msra.mxu0 0.0
        %1978 = vmatprep.subr.mxu0 0.0
        %1979 = vmatpush1.msra.mxu0 0.0
        %1980 = vmatprep.subr.mxu0 0.0
        %1981 = vmatpush1.msra.mxu0 0.0
        %1982 = vmatprep.subr.mxu0 0.0
        %1983 = vmatpush1.msra.mxu0 0.0
        %1984 = vmatprep.subr.mxu0 0.0
        %1985 = vmatpush1.msra.mxu0 0.0
        %1986 = vmatprep.subr.mxu0 0.0
        %1987 = vmatpush1.msra.mxu0 0.0
        %1988 = vmatprep.subr.mxu0 0.0
        %1989 = vmatpush1.msra.mxu0 0.0
        %1990 = vmatprep.subr.mxu0 0.0
        %1991 = vmatpush1.msra.mxu0 0.0
        %1992 = vmatprep.subr.mxu0 0.0
        %1993 = vmatpush1.msra.mxu0 %v1960
        %1994 = vmatprep.subr.mxu0 0.0
        %1995 = vmatpush1.msra.mxu0 %v1959
        %1996 = vmatprep.subr.mxu0 0.0
        %1997 = vmatpush2.msra.mxu0 0.0
        %1998 = vmatprep.subr.mxu0 0.0
        %1999 = vmatpush2.msra.mxu0 0.0
        %2000 = vmatprep.subr.mxu0 0.0
        %2001 = vmatpush2.msra.mxu0 0.0
        %2002 = vmatprep.subr.mxu0 0.0
        %2003 = vmatpush2.msra.mxu0 0.0
        %2004 = vmatprep.subr.mxu0 0.0
        %2005 = vmatpush2.msra.mxu0 0.0
        %2006 = vmatprep.subr.mxu0 0.0
        %2007 = vmatpush2.msra.mxu0 0.0
        %2008 = vmatprep.subr.mxu0 0.0
        %2009 = vmatpush2.msra.mxu0 0.0
        %2010 = vmatprep.subr.mxu0 0.0
        %2011 = vmatpush2.msra.mxu0 0.0
        %2012 = vmatprep.subr.mxu0 0.0
        %2013 = vmatpush2.msra.mxu0 0.0
        %2014 = vmatprep.subr.mxu0 0.0
        %2015 = vmatpush2.msra.mxu0 0.0
        %2016 = vmatprep.subr.mxu0 0.0
        %2017 = vmatpush2.msra.mxu0 0.0
        %2018 = vmatprep.subr.mxu0 0.0
        %2019 = vmatpush2.msra.mxu0 0.0
        %2020 = vmatprep.subr.mxu0 0.0
        %2021 = vmatpush2.msra.mxu0 0.0
        %2022 = vmatprep.subr.mxu0 0.0
        %2023 = vmatpush2.msra.mxu0 0.0
        %2024 = vmatprep.subr.mxu0 0.0
        %2025 = vmatpush2.msra.mxu0 0.0
        %2026 = vmatprep.subr.mxu0 0.0
        %2027 = vmatpush2.msra.mxu0 0.0
        %2028 = vmatprep.mubr.f32.mxu0 0.0
        %2029 = vmatmul.mubr.f32.gmra.mxu0 %v1962
        %v2030 = vpop.f32.mrf.mxu0
        %v2031 = vadd.f32 0.0, %v2030
        %v2032 = vpop.f32.mrf.mxu0
        %2033 = vdwg.mxu0
        %v2034 = vadd.f32 %v1957, %v2031
        %s2035 = scalar_lea.vmem %s5, 48
        %v2036 = vld [vmem:[%s2035] sm:$0xff]
        %v2037 = vld [vmem:[%s2035 + $0x8] sm:$0xff]
        %v2038 = vrot.slane %v1803, 3
        %v2039 = vsel %vm1796, %v2038, 0
        %2041 = vmatprep.subr.mxu0 0.0
        %2042 = vmatpush1.msra.mxu0 0.0
        %2043 = vmatprep.subr.mxu0 0.0
        %2044 = vmatpush1.msra.mxu0 0.0
        %2045 = vmatprep.subr.mxu0 0.0
        %2046 = vmatpush1.msra.mxu0 0.0
        %2047 = vmatprep.subr.mxu0 0.0
        %2048 = vmatpush1.msra.mxu0 0.0
        %2049 = vmatprep.subr.mxu0 0.0
        %2050 = vmatpush1.msra.mxu0 0.0
        %2051 = vmatprep.subr.mxu0 0.0
        %2052 = vmatpush1.msra.mxu0 0.0
        %2053 = vmatprep.subr.mxu0 0.0
        %2054 = vmatpush1.msra.mxu0 0.0
        %2055 = vmatprep.subr.mxu0 0.0
        %2056 = vmatpush1.msra.mxu0 0.0
        %2057 = vmatprep.subr.mxu0 0.0
        %2058 = vmatpush1.msra.mxu0 0.0
        %2059 = vmatprep.subr.mxu0 0.0
        %2060 = vmatpush1.msra.mxu0 0.0
        %2061 = vmatprep.subr.mxu0 0.0
        %2062 = vmatpush1.msra.mxu0 0.0
        %2063 = vmatprep.subr.mxu0 0.0
        %2064 = vmatpush1.msra.mxu0 0.0
        %2065 = vmatprep.subr.mxu0 0.0
        %2066 = vmatpush1.msra.mxu0 0.0
        %2067 = vmatprep.subr.mxu0 0.0
        %2068 = vmatpush1.msra.mxu0 0.0
        %2069 = vmatprep.subr.mxu0 0.0
        %2070 = vmatpush1.msra.mxu0 %v2037
        %2071 = vmatprep.subr.mxu0 0.0
        %2072 = vmatpush1.msra.mxu0 %v2036
        %2073 = vmatprep.subr.mxu0 0.0
        %2074 = vmatpush2.msra.mxu0 0.0
        %2075 = vmatprep.subr.mxu0 0.0
        %2076 = vmatpush2.msra.mxu0 0.0
        %2077 = vmatprep.subr.mxu0 0.0
        %2078 = vmatpush2.msra.mxu0 0.0
        %2079 = vmatprep.subr.mxu0 0.0
        %2080 = vmatpush2.msra.mxu0 0.0
        %2081 = vmatprep.subr.mxu0 0.0
        %2082 = vmatpush2.msra.mxu0 0.0
        %2083 = vmatprep.subr.mxu0 0.0
        %2084 = vmatpush2.msra.mxu0 0.0
        %2085 = vmatprep.subr.mxu0 0.0
        %2086 = vmatpush2.msra.mxu0 0.0
        %2087 = vmatprep.subr.mxu0 0.0
        %2088 = vmatpush2.msra.mxu0 0.0
        %2089 = vmatprep.subr.mxu0 0.0
        %2090 = vmatpush2.msra.mxu0 0.0
        %2091 = vmatprep.subr.mxu0 0.0
        %2092 = vmatpush2.msra.mxu0 0.0
        %2093 = vmatprep.subr.mxu0 0.0
        %2094 = vmatpush2.msra.mxu0 0.0
        %2095 = vmatprep.subr.mxu0 0.0
        %2096 = vmatpush2.msra.mxu0 0.0
        %2097 = vmatprep.subr.mxu0 0.0
        %2098 = vmatpush2.msra.mxu0 0.0
        %2099 = vmatprep.subr.mxu0 0.0
        %2100 = vmatpush2.msra.mxu0 0.0
        %2101 = vmatprep.subr.mxu0 0.0
        %2102 = vmatpush2.msra.mxu0 0.0
        %2103 = vmatprep.subr.mxu0 0.0
        %2104 = vmatpush2.msra.mxu0 0.0
        %2105 = vmatprep.mubr.f32.mxu0 0.0
        %2106 = vmatmul.mubr.f32.gmra.mxu0 %v2039
        %v2107 = vpop.f32.mrf.mxu0
        %v2108 = vadd.f32 0.0, %v2107
        %v2109 = vpop.f32.mrf.mxu0
        %2110 = vdwg.mxu0
        %v2111 = vadd.f32 %v2034, %v2108
        %s2112 = scalar_lea.vmem %s5, 64
        %v2113 = vld [vmem:[%s2112] sm:$0xff]
        %v2114 = vld [vmem:[%s2112 + $0x8] sm:$0xff]
        %v2115 = vrot.slane %v1803, 4
        %v2116 = vsel %vm1796, %v2115, 0
        %2118 = vmatprep.subr.mxu0 0.0
        %2119 = vmatpush1.msra.mxu0 0.0
        %2120 = vmatprep.subr.mxu0 0.0
        %2121 = vmatpush1.msra.mxu0 0.0
        %2122 = vmatprep.subr.mxu0 0.0
        %2123 = vmatpush1.msra.mxu0 0.0
        %2124 = vmatprep.subr.mxu0 0.0
        %2125 = vmatpush1.msra.mxu0 0.0
        %2126 = vmatprep.subr.mxu0 0.0
        %2127 = vmatpush1.msra.mxu0 0.0
        %2128 = vmatprep.subr.mxu0 0.0
        %2129 = vmatpush1.msra.mxu0 0.0
        %2130 = vmatprep.subr.mxu0 0.0
        %2131 = vmatpush1.msra.mxu0 0.0
        %2132 = vmatprep.subr.mxu0 0.0
        %2133 = vmatpush1.msra.mxu0 0.0
        %2134 = vmatprep.subr.mxu0 0.0
        %2135 = vmatpush1.msra.mxu0 0.0
        %2136 = vmatprep.subr.mxu0 0.0
        %2137 = vmatpush1.msra.mxu0 0.0
        %2138 = vmatprep.subr.mxu0 0.0
        %2139 = vmatpush1.msra.mxu0 0.0
        %2140 = vmatprep.subr.mxu0 0.0
        %2141 = vmatpush1.msra.mxu0 0.0
        %2142 = vmatprep.subr.mxu0 0.0
        %2143 = vmatpush1.msra.mxu0 0.0
        %2144 = vmatprep.subr.mxu0 0.0
        %2145 = vmatpush1.msra.mxu0 0.0
        %2146 = vmatprep.subr.mxu0 0.0
        %2147 = vmatpush1.msra.mxu0 %v2114
        %2148 = vmatprep.subr.mxu0 0.0
        %2149 = vmatpush1.msra.mxu0 %v2113
        %2150 = vmatprep.subr.mxu0 0.0
        %2151 = vmatpush2.msra.mxu0 0.0
        %2152 = vmatprep.subr.mxu0 0.0
        %2153 = vmatpush2.msra.mxu0 0.0
        %2154 = vmatprep.subr.mxu0 0.0
        %2155 = vmatpush2.msra.mxu0 0.0
        %2156 = vmatprep.subr.mxu0 0.0
        %2157 = vmatpush2.msra.mxu0 0.0
        %2158 = vmatprep.subr.mxu0 0.0
        %2159 = vmatpush2.msra.mxu0 0.0
        %2160 = vmatprep.subr.mxu0 0.0
        %2161 = vmatpush2.msra.mxu0 0.0
        %2162 = vmatprep.subr.mxu0 0.0
        %2163 = vmatpush2.msra.mxu0 0.0
        %2164 = vmatprep.subr.mxu0 0.0
        %2165 = vmatpush2.msra.mxu0 0.0
        %2166 = vmatprep.subr.mxu0 0.0
        %2167 = vmatpush2.msra.mxu0 0.0
        %2168 = vmatprep.subr.mxu0 0.0
        %2169 = vmatpush2.msra.mxu0 0.0
        %2170 = vmatprep.subr.mxu0 0.0
        %2171 = vmatpush2.msra.mxu0 0.0
        %2172 = vmatprep.subr.mxu0 0.0
        %2173 = vmatpush2.msra.mxu0 0.0
        %2174 = vmatprep.subr.mxu0 0.0
        %2175 = vmatpush2.msra.mxu0 0.0
        %2176 = vmatprep.subr.mxu0 0.0
        %2177 = vmatpush2.msra.mxu0 0.0
        %2178 = vmatprep.subr.mxu0 0.0
        %2179 = vmatpush2.msra.mxu0 0.0
        %2180 = vmatprep.subr.mxu0 0.0
        %2181 = vmatpush2.msra.mxu0 0.0
        %2182 = vmatprep.mubr.f32.mxu0 0.0
        %2183 = vmatmul.mubr.f32.gmra.mxu0 %v2116
        %v2184 = vpop.f32.mrf.mxu0
        %v2185 = vadd.f32 0.0, %v2184
        %v2186 = vpop.f32.mrf.mxu0
        %2187 = vdwg.mxu0
        %v2188 = vadd.f32 %v2111, %v2185
        %s2189 = scalar_lea.vmem %s5, 80
        %v2190 = vld [vmem:[%s2189] sm:$0xff]
        %v2191 = vld [vmem:[%s2189 + $0x8] sm:$0xff]
        %v2192 = vrot.slane %v1803, 5
        %v2193 = vsel %vm1796, %v2192, 0
        %2195 = vmatprep.subr.mxu0 0.0
        %2196 = vmatpush1.msra.mxu0 0.0
        %2197 = vmatprep.subr.mxu0 0.0
        %2198 = vmatpush1.msra.mxu0 0.0
        %2199 = vmatprep.subr.mxu0 0.0
        %2200 = vmatpush1.msra.mxu0 0.0
        %2201 = vmatprep.subr.mxu0 0.0
        %2202 = vmatpush1.msra.mxu0 0.0
        %2203 = vmatprep.subr.mxu0 0.0
        %2204 = vmatpush1.msra.mxu0 0.0
        %2205 = vmatprep.subr.mxu0 0.0
        %2206 = vmatpush1.msra.mxu0 0.0
        %2207 = vmatprep.subr.mxu0 0.0
        %2208 = vmatpush1.msra.mxu0 0.0
        %2209 = vmatprep.subr.mxu0 0.0
        %2210 = vmatpush1.msra.mxu0 0.0
        %2211 = vmatprep.subr.mxu0 0.0
        %2212 = vmatpush1.msra.mxu0 0.0
        %2213 = vmatprep.subr.mxu0 0.0
        %2214 = vmatpush1.msra.mxu0 0.0
        %2215 = vmatprep.subr.mxu0 0.0
        %2216 = vmatpush1.msra.mxu0 0.0
        %2217 = vmatprep.subr.mxu0 0.0
        %2218 = vmatpush1.msra.mxu0 0.0
        %2219 = vmatprep.subr.mxu0 0.0
        %2220 = vmatpush1.msra.mxu0 0.0
        %2221 = vmatprep.subr.mxu0 0.0
        %2222 = vmatpush1.msra.mxu0 0.0
        %2223 = vmatprep.subr.mxu0 0.0
        %2224 = vmatpush1.msra.mxu0 %v2191
        %2225 = vmatprep.subr.mxu0 0.0
        %2226 = vmatpush1.msra.mxu0 %v2190
        %2227 = vmatprep.subr.mxu0 0.0
        %2228 = vmatpush2.msra.mxu0 0.0
        %2229 = vmatprep.subr.mxu0 0.0
        %2230 = vmatpush2.msra.mxu0 0.0
        %2231 = vmatprep.subr.mxu0 0.0
        %2232 = vmatpush2.msra.mxu0 0.0
        %2233 = vmatprep.subr.mxu0 0.0
        %2234 = vmatpush2.msra.mxu0 0.0
        %2235 = vmatprep.subr.mxu0 0.0
        %2236 = vmatpush2.msra.mxu0 0.0
        %2237 = vmatprep.subr.mxu0 0.0
        %2238 = vmatpush2.msra.mxu0 0.0
        %2239 = vmatprep.subr.mxu0 0.0
        %2240 = vmatpush2.msra.mxu0 0.0
        %2241 = vmatprep.subr.mxu0 0.0
        %2242 = vmatpush2.msra.mxu0 0.0
        %2243 = vmatprep.subr.mxu0 0.0
        %2244 = vmatpush2.msra.mxu0 0.0
        %2245 = vmatprep.subr.mxu0 0.0
        %2246 = vmatpush2.msra.mxu0 0.0
        %2247 = vmatprep.subr.mxu0 0.0
        %2248 = vmatpush2.msra.mxu0 0.0
        %2249 = vmatprep.subr.mxu0 0.0
        %2250 = vmatpush2.msra.mxu0 0.0
        %2251 = vmatprep.subr.mxu0 0.0
        %2252 = vmatpush2.msra.mxu0 0.0
        %2253 = vmatprep.subr.mxu0 0.0
        %2254 = vmatpush2.msra.mxu0 0.0
        %2255 = vmatprep.subr.mxu0 0.0
        %2256 = vmatpush2.msra.mxu0 0.0
        %2257 = vmatprep.subr.mxu0 0.0
        %2258 = vmatpush2.msra.mxu0 0.0
        %2259 = vmatprep.mubr.f32.mxu0 0.0
        %2260 = vmatmul.mubr.f32.gmra.mxu0 %v2193
        %v2261 = vpop.f32.mrf.mxu0
        %v2262 = vadd.f32 0.0, %v2261
        %v2263 = vpop.f32.mrf.mxu0
        %2264 = vdwg.mxu0
        %v2265 = vadd.f32 %v2188, %v2262
        %vm2266 = vcmask 49152
        %2267 = vst.msk [vmem:[%s270] sm:$0x1] %vm2266, %v2265
        %s2268 = sand.u32 %s181, 1
        %s2269 = scalar_lea.sflag [#allocation4], %s2268
        %s2270 = sand.u32 %s181, 1
        %s2271 = scalar_lea.vmem [#allocation3], %s2270
        // Predicated region
        $region49: #{tpu_custom_call.1} parent=47 // pred_check
          %p2272 = pneg %p191
        $region50: #{tpu_custom_call.1} parent=47 // pred_check_branch
          %2274 = sbr.rel (%p2272) target = $region52
        $region51: #{tpu_custom_call.1} parent=47 // pred_region
          %s2276 = ssub.s32 16, 16
          %2277 = vsyncadd %s2269, %s2276
          %s2278 = smul.addr %s21, 16
          %s2279 = scalar_lea.hbm %s7, %s2278
          %s2281 = sshll.u32 %s2271, 4
          %s2282 = int_to_ptr.vmem [resolvable:$true] %s2281
          %2284 = dma.vmem_to_hbm [thread:$0]  %s2282, 16, %s2279, %s2269
        $region52: #{tpu_custom_call.1} parent=47 // pred_fallthru
          _
      $region48: #{tpu_custom_call.1} parent=5 // pred_fallthru
        _
      %p2285 = scmp.le.s32.totalorder 2, %s16
      // Predicated region
      $region53: #{tpu_custom_call.1} parent=5 // pred_check
        %p2286 = pneg %p2285
      $region54: #{tpu_custom_call.1} parent=5 // pred_check_branch
        %2288 = sbr.rel (%p2286) target = $region56
      $region55: #{tpu_custom_call.1} parent=5 // pred_region
        %s2289 = ssub.s32 %s16, 2
        // Predicated region
        $region57: #{tpu_custom_call.1} parent=55 // pred_check
          %p2290 = pneg %p197
        $region58: #{tpu_custom_call.1} parent=55 // pred_check_branch
          %2292 = sbr.rel (%p2290) target = $region60
        $region59: #{tpu_custom_call.1} parent=55 // pred_region
          %s2293 = sand.u32 %s182, 1
          %s2294 = scalar_lea.sflag [#allocation4], %s2293
          %s2295 = sand.u32 %s182, 1
          %s2296 = scalar_lea.vmem [#allocation3], %s2295
          %2297 = dma.done %s2294, 16
        $region60: #{tpu_custom_call.1} parent=55 // pred_fallthru
          _
      $region56: #{tpu_custom_call.1} parent=5 // pred_fallthru
        _
    $region6: #{tpu_custom_call.1} parent=1 // loop_footer
      %s20 = sadd.s32 1, %s16
    $region7: #{tpu_custom_call.1} parent=1 // loop_footer_branch
      %15 = sbr.rel target = $region3
    $region8: #{tpu_custom_call.1} parent=1 // loop_exit
      _
    %2298 = vsyncpa [#allocation4], 1
    %s2299 = scalar_lea.sflag [#allocation4], 1
    %2300 = vsyncpa %s2299, 1

</llo_original>
